<compile_context>
chip_gen: v7x
topology: tpu7x:2x2x1
jax: 0.10.0
libtpu: 0.0.40
codegen_flags: <defaults>
</compile_context>

<pallas_src>
import functools

import jax
import jax.numpy as jnp
from jax import lax
from jax.experimental import pallas as pl
from jax.experimental.pallas import tpu as pltpu


def _round_up(v, m):
    return (v + m - 1) // m * m


def _auto_config(tn, vmem_limit_bytes):
    """Generation-aware defaults: bigger tiles / scoped VMEM on 128-MiB parts."""
    if tn is not None and vmem_limit_bytes is not None:
        return tn, vmem_limit_bytes
    try:
        big_vmem = pltpu.get_tpu_info().vmem_capacity_bytes >= (100 << 20)
    except Exception:  # be conservative (v7x has 64 MiB VMEM per core)
        big_vmem = False
    if tn is None:
        tn = 2048 if big_vmem else 1024
    if vmem_limit_bytes is None:
        vmem_limit_bytes = (96 << 20) if big_vmem else (48 << 20)
    return tn, vmem_limit_bytes


def _pick_channel_tile(C, N, budget_bytes=4 << 20):
    """Largest channel tile (divisor of C, multiple of 8 or C itself) whose
    (ct, N) f32 block stays within budget_bytes."""
    cands = sorted({C} | {d for d in range(8, C, 8) if C % d == 0})
    fitting = [d for d in cands if d * N * 4 <= budget_bytes]
    return max(fitting) if fitting else min(cands)


# ---------------------------------------------------------------------------
# Pass 1: per-tile encoding aggregation -> per-image encoding vector `en`.
# ---------------------------------------------------------------------------
def enc_agg_kernel(
    x_ref,       # (1, TN, Cp) bf16   one spatial tile of one batch element
    w1t_ref,     # (Cp, Cp)   bf16    1x1-conv weight (transposed, BN1 scale folded)
    bn1b_ref,    # (1, Cp)    f32     BN1 bias (eval-mode, folded)
    cwt_ref,     # (Cp, K)    bf16    codewords, transposed (for the dist matmul)
    cw_ref,      # (K, Cp)    f32     codewords
    esc_ref,     # (1, K)     f32     encoding smoothing factors
    c2_ref,      # (1, K)     f32     precomputed ||c_k||^2
    bn2s_ref,    # (K, 1)     f32     BN2 scale (eval-mode, folded)
    bn2b_ref,    # (K, 1)     f32     BN2 bias
    en_ref,      # (1, 1, Cp) f32     output: per-image encoding
    at_acc,      # (K, Cp)    f32     scratch: sum_n a[n,k] * t[n,:]
    asum_acc,    # (K, 1)     f32     scratch: sum_n a[n,k]
    *, n_valid, mask_rows,
):
    n_idx = pl.program_id(1)
    tn = x_ref.shape[1]

    @pl.when(n_idx == 0)
    def _init():
        at_acc[...] = jnp.zeros_like(at_acc)
        asum_acc[...] = jnp.zeros_like(asum_acc)

    # -- 1x1 conv (BN1 scale folded into weight) + bias + ReLU  (bf16 MXU) ----
    xb = x_ref[0]                                                      # (TN, Cp) bf16
    t = jnp.dot(xb, w1t_ref[...], preferred_element_type=jnp.float32)
    t = jnp.maximum(t + bn1b_ref[...], 0.0)                            # (TN, Cp) f32
    tb = t.astype(jnp.bfloat16)

    # -- scaled-L2 distances to codewords (expansion kept in f32) -------------
    xc = jnp.dot(tb, cwt_ref[...], preferred_element_type=jnp.float32)  # (TN, K)
    x2 = jnp.sum(t * t, axis=-1, keepdims=True)                         # (TN, 1)
    dist = (x2 - 2.0 * xc + c2_ref[...]) * esc_ref[...]                  # (TN, K)

    # -- softmax over K (EUP exp + approx reciprocal frees VALU slots) --------
    m = jnp.max(dist, axis=-1, keepdims=True)
    e = jnp.exp(dist - m)
    a = e * pl.reciprocal(jnp.sum(e, axis=-1, keepdims=True), approx=True)

    if mask_rows:
        # zero the assignments of zero-padded spatial rows
        row = lax.broadcasted_iota(jnp.int32, (tn, 1), 0) + n_idx * tn
        a = jnp.where(row < n_valid, a, 0.0)

    # -- accumulate residual aggregation (bf16 MXU operands, f32 acc) ---------
    at_acc[...] += lax.dot_general(
        a.astype(jnp.bfloat16), tb, (((0,), (0,)), ((), ())),
        preferred_element_type=jnp.float32)                           # (K, Cp)
    asum_acc[...] += jnp.sum(a, axis=0)[:, None]                      # (K, 1)

    # -- finalize: E = at - asum*c, BN2(eval) + ReLU + mean over codes --------
    @pl.when(n_idx == pl.num_programs(1) - 1)
    def _finalize():
        E = at_acc[...] - asum_acc[...] * cw_ref[...]                 # (K, Cp)
        E = jnp.maximum(E * bn2s_ref[...] + bn2b_ref[...], 0.0)
        en_ref[0] = jnp.mean(E, axis=0, keepdims=True)                # (1, Cp)


# ---------------------------------------------------------------------------
# Pass 2: channel gating  out = relu(x + x * gamma), native NCHW layout.
# ---------------------------------------------------------------------------
def enc_apply_kernel(x_ref, gamma_ref, out_ref):
    x = x_ref[0]                                                      # (ct, N) f32
    out_ref[0] = jnp.maximum(x + x * gamma_ref[0], 0.0)               # gamma: (ct, 1)


# ---------------------------------------------------------------------------
# Wrapper
# ---------------------------------------------------------------------------
def enc_module_forward(x_nchw, params, *, tn=None, vmem_limit_bytes=None):
    """x_nchw: (B, C, H, W) float32.  Returns (out_nchw, se_logits)."""
    B, C, H, W = x_nchw.shape
    N = H * W
    K = params["codewords"].shape[0]
    f32, bf16 = jnp.float32, jnp.bfloat16

    tn, vmem_limit_bytes = _auto_config(tn, vmem_limit_bytes)

    Cp = _round_up(C, 128)                     # lane-dense channel dim
    tn = _round_up(max(8, min(tn, N)), 8)      # spatial tile rows (mult of 8)
    Np = _round_up(N, tn)
    nt = Np // tn

    # --- pass-1 input: channels-last bf16 copy (pad only when needed) --------
    x_cl = jnp.transpose(x_nchw.astype(bf16), (0, 2, 3, 1)).reshape(B, N, C)
    if Np != N or Cp != C:
        x_cl = jnp.pad(x_cl, ((0, 0), (0, Np - N), (0, Cp - C)))

    # --- one-time parameter prep (fold BN1 scale into the conv weight) -------
    w1t = (params["w1"].T * params["bn1_scale"][None, :]).astype(f32)
    if Cp != C:
        w1t = jnp.pad(w1t, ((0, Cp - C), (0, Cp - C)))
    w1t = w1t.astype(bf16)                                             # (Cp, Cp)
    bn1b = jnp.pad(params["bn1_bias"], (0, Cp - C))[None, :].astype(f32)
    cw = jnp.pad(params["codewords"], ((0, 0), (0, Cp - C))).astype(f32)
    cwt = cw.T.astype(bf16)                                            # (Cp, K)
    c2 = jnp.sum(cw * cw, axis=-1)[None, :]                            # (1, K)
    esc = params["enc_scale"][None, :].astype(f32)                     # (1, K)
    bn2s = params["bn2_scale"][:, None].astype(f32)                    # (K, 1)
    bn2b = params["bn2_bias"][:, None].astype(f32)                     # (K, 1)

    const = lambda b, n: (0, 0)   # weights: same block every step -> no re-DMA

    # --- pass 1: aggregate the encoding --------------------------------------
    en_pad = pl.pallas_call(
        functools.partial(enc_agg_kernel, n_valid=N, mask_rows=(Np != N)),
        grid=(B, nt),
        in_specs=[
            pl.BlockSpec((1, tn, Cp), lambda b, n: (b, n, 0)),   # x tile (bf16)
            pl.BlockSpec((Cp, Cp), const),                       # w1t (bf16)
            pl.BlockSpec((1, Cp), const),                        # bn1 bias
            pl.BlockSpec((Cp, K), const),                        # cw^T (bf16)
            pl.BlockSpec((K, Cp), const),                        # cw
            pl.BlockSpec((1, K), const),                         # smoothing
            pl.BlockSpec((1, K), const),                         # ||c||^2
            pl.BlockSpec((K, 1), const),                         # bn2 scale
            pl.BlockSpec((K, 1), const),                         # bn2 bias
        ],
        out_specs=pl.BlockSpec((1, 1, Cp), lambda b, n: (b, 0, 0)),
        out_shape=jax.ShapeDtypeStruct((B, 1, Cp), f32),
        scratch_shapes=[pltpu.VMEM((K, Cp), f32), pltpu.VMEM((K, 1), f32)],
        compiler_params=pltpu.CompilerParams(
            dimension_semantics=("parallel", "arbitrary"),
            vmem_limit_bytes=vmem_limit_bytes),
        cost_estimate=pl.CostEstimate(
            flops=2 * B * Np * Cp * (Cp + 2 * K),
            transcendentals=B * Np * K,
            bytes_accessed=2 * B * Np * Cp + 4 * B * Cp + 2 * Cp * (Cp + K)),
    )(x_cl, w1t, bn1b, cwt, cw, esc, c2, bn2s, bn2b)

    # --- tiny heads in the wrapper (<0.1% of total FLOPs) --------------------
    en = en_pad[:, 0, :C]                                              # (B, C)
    gamma = jax.nn.sigmoid(en @ params["w_fc"].T + params["b_fc"])     # (B, C)
    se = en @ params["w_se"].T + params["b_se"]                        # (B, nclass)

    # --- pass 2: out = relu(x + x * gamma) in native NCHW --------------------
    x_flat = x_nchw.reshape(B, C, N)            # free reshape, no transpose/pad
    gamma3 = gamma[:, :, None].astype(f32)                             # (B, C, 1)
    ct = _pick_channel_tile(C, N)
    nc = C // ct

    out_flat = pl.pallas_call(
        enc_apply_kernel,
        grid=(B, nc),
        in_specs=[
            pl.BlockSpec((1, ct, N), lambda b, c: (b, c, 0)),
            pl.BlockSpec((1, ct, 1), lambda b, c: (b, c, 0)),
        ],
        out_specs=pl.BlockSpec((1, ct, N), lambda b, c: (b, c, 0)),
        out_shape=jax.ShapeDtypeStruct((B, C, N), f32),
        compiler_params=pltpu.CompilerParams(
            dimension_semantics=("parallel", "parallel"),
            vmem_limit_bytes=vmem_limit_bytes),
        cost_estimate=pl.CostEstimate(
            flops=2 * B * C * N, transcendentals=0,
            bytes_accessed=8 * B * C * N),
    )(x_flat, gamma3)

    return out_flat.reshape(B, C, H, W), se


# ---------------------------------------------------------------------------
# Pure-JAX reference (mirrors the kernel's bf16-MXU / f32-accumulate math)
# ---------------------------------------------------------------------------
def ref_forward(x_nchw, p):
    B, C, H, W = x_nchw.shape
    f32, bf16 = jnp.float32, jnp.bfloat16
    x = jnp.transpose(x_nchw, (0, 2, 3, 1)).reshape(B, -1, C)

    w1t = (p["w1"].T * p["bn1_scale"][None, :]).astype(bf16)
    t = jnp.einsum("bnc,cd->bnd", x.astype(bf16), w1t, preferred_element_type=f32)
    t = jnp.maximum(t + p["bn1_bias"][None, None, :], 0.0)
    tb = t.astype(bf16)

    cw, sk = p["codewords"], p["enc_scale"]
    xc = jnp.einsum("bnd,kd->bnk", tb, cw.astype(bf16), preferred_element_type=f32)
    dist = (jnp.sum(t * t, -1, keepdims=True) - 2.0 * xc
            + jnp.sum(cw * cw, -1)[None, None, :]) * sk[None, None, :]
    a = jax.nn.softmax(dist, axis=-1)

    at = jnp.einsum("bnk,bnd->bkd", a.astype(bf16), tb, preferred_element_type=f32)
    E = at - jnp.sum(a, axis=1)[..., None] * cw[None]
    E = jnp.maximum(E * p["bn2_scale"][None, :, None] + p["bn2_bias"][None, :, None], 0.0)
    en = jnp.mean(E, axis=1)                                           # (B, C)

    gamma = jax.nn.sigmoid(en @ p["w_fc"].T + p["b_fc"])
    out = jnp.maximum(x + x * gamma[:, None, :], 0.0)
    out = jnp.transpose(out.reshape(B, H, W, C), (0, 3, 1, 2))
    se = en @ p["w_se"].T + p["b_se"]
    return out, se


def make_params(key, in_channels, nclass, ncodes):
    """Deterministic synthetic parameters (eval-mode BN folded to scale/bias)."""
    C, K = in_channels, ncodes
    ks = jax.random.split(key, 12)
    eps = 1e-5

    w1 = jax.random.normal(ks[0], (C, C), jnp.float32) * 0.1   # 1x1 conv (Cout, Cin)

    g1 = 1.0 + 0.1 * jax.random.normal(ks[1], (C,), jnp.float32)
    b1 = 0.1 * jax.random.normal(ks[2], (C,), jnp.float32)
    rm1 = 0.1 * jax.random.normal(ks[3], (C,), jnp.float32)
    rv1 = 1.0 + 0.1 * jax.random.uniform(ks[4], (C,), jnp.float32)
    bn1_scale = g1 / jnp.sqrt(rv1 + eps)
    bn1_bias = b1 - rm1 * bn1_scale

    std = 1.0 / ((K * C) ** 0.5)
    codewords = jax.random.uniform(ks[5], (K, C), jnp.float32, -std, std)
    enc_scale = jax.random.uniform(ks[6], (K,), jnp.float32, -1.0, 0.0)

    g2 = 1.0 + 0.1 * jax.random.normal(ks[7], (K,), jnp.float32)
    b2 = 0.1 * jax.random.normal(ks[8], (K,), jnp.float32)
    bn2_scale = g2
    bn2_bias = b2

    w_fc = jax.random.normal(ks[9], (C, C), jnp.float32) * 0.1
    b_fc = jnp.zeros((C,), jnp.float32)
    w_se = jax.random.normal(ks[10], (nclass, C), jnp.float32) * 0.1
    b_se = 0.01 * jax.random.normal(ks[11], (nclass,), jnp.float32)

    return dict(
        w1=w1, bn1_scale=bn1_scale, bn1_bias=bn1_bias,
        codewords=codewords, enc_scale=enc_scale,
        bn2_scale=bn2_scale, bn2_bias=bn2_bias,
        w_fc=w_fc, b_fc=b_fc, w_se=w_se, b_se=b_se,
    )


if __name__ == "__main__":
    B, C, H, W = 2, 32, 12, 12     # N = 144 -> 3 tiles of 64 (last tile masked)
    NCLASS, NCODES = 8, 32

    key = jax.random.PRNGKey(0)
    kx, kp = jax.random.split(key)
    x = jax.random.normal(kx, (B, C, H, W), jnp.float32)
    params = make_params(kp, C, NCLASS, NCODES)

    out, se = enc_module_forward(x, params, tn=64)
    out = jax.block_until_ready(out)
    se = jax.block_until_ready(se)

    out_ref, se_ref = ref_forward(x, params)
    assert out.shape == (B, C, H, W) and se.shape == (B, NCLASS)
    assert jnp.allclose(out, out_ref, rtol=1e-2, atol=1e-2), (
        "out max abs err", float(jnp.max(jnp.abs(out - out_ref))))
    assert jnp.allclose(se, se_ref, rtol=1e-2, atol=1e-2), (
        "se max abs err", float(jnp.max(jnp.abs(se - se_ref))))

    print("KERNEL_OK")
</pallas_src>

<mosaic_0001>
module attributes {stable_mosaic.version = 11 : i64} {
  func.func @enc_agg_kernel(%arg0: i32, %arg1: i32, %arg2: memref<1x64x128xbf16, #tpu.memory_space<vmem>>, %arg3: memref<128x128xbf16, #tpu.memory_space<vmem>>, %arg4: memref<1x128xf32, #tpu.memory_space<vmem>>, %arg5: memref<128x32xbf16, #tpu.memory_space<vmem>>, %arg6: memref<32x128xf32, #tpu.memory_space<vmem>>, %arg7: memref<1x32xf32, #tpu.memory_space<vmem>>, %arg8: memref<1x32xf32, #tpu.memory_space<vmem>>, %arg9: memref<32x1xf32, #tpu.memory_space<vmem>>, %arg10: memref<32x1xf32, #tpu.memory_space<vmem>>, %arg11: memref<1x1x128xf32, #tpu.memory_space<vmem>>, %arg12: memref<32x128xf32, #tpu.memory_space<vmem>>, %arg13: memref<32x1xf32, #tpu.memory_space<vmem>>) attributes {dimension_semantics = [#tpu.dimension_semantics<parallel>, #tpu.dimension_semantics<arbitrary>], iteration_bounds = array<i64: 2, 3>, scalar_prefetch = 0 : i64, scratch_operands = 2 : i64, tpu.core_type = #tpu.core_type<tc>, window_params = [{transform_indices = @transform_0, window_bounds = array<i64: 1, 64, 128>}, {pipeline_mode = #tpu.pipeline_mode<synchronous>, transform_indices = @transform_1, window_bounds = array<i64: 128, 128>}, {pipeline_mode = #tpu.pipeline_mode<synchronous>, transform_indices = @transform_2, window_bounds = array<i64: 1, 128>}, {pipeline_mode = #tpu.pipeline_mode<synchronous>, transform_indices = @transform_3, window_bounds = array<i64: 128, 32>}, {pipeline_mode = #tpu.pipeline_mode<synchronous>, transform_indices = @transform_4, window_bounds = array<i64: 32, 128>}, {pipeline_mode = #tpu.pipeline_mode<synchronous>, transform_indices = @transform_5, window_bounds = array<i64: 1, 32>}, {pipeline_mode = #tpu.pipeline_mode<synchronous>, transform_indices = @transform_6, window_bounds = array<i64: 1, 32>}, {pipeline_mode = #tpu.pipeline_mode<synchronous>, transform_indices = @transform_7, window_bounds = array<i64: 32, 1>}, {pipeline_mode = #tpu.pipeline_mode<synchronous>, transform_indices = @transform_8, window_bounds = array<i64: 32, 1>}, {transform_indices = @transform_9, window_bounds = array<i64: 1, 1, 128>}]} {
    %c0_i32 = arith.constant 0 : i32
    %0 = arith.cmpi eq, %arg1, %c0_i32 : i32
    %1 = arith.extui %0 : i1 to i32
    %c0_i32_0 = arith.constant 0 : i32
    %2 = arith.cmpi ne, %1, %c0_i32_0 : i32
    scf.if %2 {
      %cst_31 = arith.constant 0.000000e+00 : f32
      %61 = vector.broadcast %cst_31 : f32 to vector<32x128xf32>
      %c0_32 = arith.constant 0 : index
      %c0_33 = arith.constant 0 : index
      %62 = vector.load %arg12[%c0_32, %c0_33] : memref<32x128xf32, #tpu.memory_space<vmem>>, vector<32x128xf32>
      tpu.vector_store %arg12[%c0_32, %c0_33], %61 {strides = array<i32>} : memref<32x128xf32, #tpu.memory_space<vmem>>, vector<32x128xf32>,
      %cst_34 = arith.constant 0.000000e+00 : f32
      %63 = vector.broadcast %cst_34 : f32 to vector<32x1xf32>
      %c0_35 = arith.constant 0 : index
      %c0_36 = arith.constant 0 : index
      %64 = vector.load %arg13[%c0_35, %c0_36] : memref<32x1xf32, #tpu.memory_space<vmem>>, vector<32x1xf32>
      tpu.vector_store %arg13[%c0_35, %c0_36], %63 {strides = array<i32>} : memref<32x1xf32, #tpu.memory_space<vmem>>, vector<32x1xf32>,
    } else {
    }
    %c0 = arith.constant 0 : index
    %c0_1 = arith.constant 0 : index
    %c0_2 = arith.constant 0 : index
    %3 = vector.load %arg2[%c0, %c0_1, %c0_2] : memref<1x64x128xbf16, #tpu.memory_space<vmem>>, vector<1x64x128xbf16>
    %4 = vector.shape_cast %3 : vector<1x64x128xbf16> to vector<64x128xbf16>
    %c0_3 = arith.constant 0 : index
    %c0_4 = arith.constant 0 : index
    %5 = vector.load %arg3[%c0_3, %c0_4] : memref<128x128xbf16, #tpu.memory_space<vmem>>, vector<128x128xbf16>
    %cst = arith.constant dense<0.000000e+00> : vector<64x128xf32>
    %6 = tpu.matmul %4, %5, %cst {dimension_numbers = #tpu.dot_dimension_numbers<[1], [0], [0], [1], [0, 0, 1, 1], [], []>} : vector<64x128xbf16>, vector<128x128xbf16>, vector<64x128xf32> -> vector<64x128xf32>
    %c0_5 = arith.constant 0 : index
    %c0_6 = arith.constant 0 : index
    %7 = vector.load %arg4[%c0_5, %c0_6] : memref<1x128xf32, #tpu.memory_space<vmem>>, vector<1x128xf32>
    %8 = vector.broadcast %7 : vector<1x128xf32> to vector<64x128xf32>
    %9 = arith.addf %6, %8 : vector<64x128xf32>
    %cst_7 = arith.constant 0.000000e+00 : f32
    %10 = vector.broadcast %cst_7 : f32 to vector<64x128xf32>
    %11 = arith.maximumf %9, %10 : vector<64x128xf32>
    %12 = arith.truncf %11 : vector<64x128xf32> to vector<64x128xbf16>
    %c0_8 = arith.constant 0 : index
    %c0_9 = arith.constant 0 : index
    %13 = vector.load %arg5[%c0_8, %c0_9] : memref<128x32xbf16, #tpu.memory_space<vmem>>, vector<128x32xbf16>
    %cst_10 = arith.constant dense<0.000000e+00> : vector<64x32xf32>
    %14 = tpu.matmul %12, %13, %cst_10 {dimension_numbers = #tpu.dot_dimension_numbers<[1], [0], [0], [1], [0, 0, 1, 1], [], []>} : vector<64x128xbf16>, vector<128x32xbf16>, vector<64x32xf32> -> vector<64x32xf32>
    %15 = arith.mulf %11, %11 : vector<64x128xf32>
    %cst_11 = arith.constant dense<0.000000e+00> : vector<64xf32>
    %16 = vector.multi_reduction <add>, %15, %cst_11 [1] : vector<64x128xf32> to vector<64xf32>
    %17 = vector.shape_cast %16 : vector<64xf32> to vector<64x1xf32>
    %cst_12 = arith.constant 2.000000e+00 : f32
    %18 = vector.broadcast %cst_12 : f32 to vector<64x32xf32>
    %19 = arith.mulf %18, %14 : vector<64x32xf32>
    %20 = vector.broadcast %17 : vector<64x1xf32> to vector<64x32xf32>
    %21 = arith.subf %20, %19 : vector<64x32xf32>
    %c0_13 = arith.constant 0 : index
    %c0_14 = arith.constant 0 : index
    %22 = vector.load %arg8[%c0_13, %c0_14] : memref<1x32xf32, #tpu.memory_space<vmem>>, vector<1x32xf32>
    %23 = vector.broadcast %22 : vector<1x32xf32> to vector<64x32xf32>
    %24 = arith.addf %21, %23 : vector<64x32xf32>
    %c0_15 = arith.constant 0 : index
    %c0_16 = arith.constant 0 : index
    %25 = vector.load %arg7[%c0_15, %c0_16] : memref<1x32xf32, #tpu.memory_space<vmem>>, vector<1x32xf32>
    %26 = vector.broadcast %25 : vector<1x32xf32> to vector<64x32xf32>
    %27 = arith.mulf %24, %26 : vector<64x32xf32>
    %cst_17 = arith.constant dense<0xFF800000> : vector<64xf32>
    %28 = vector.multi_reduction <maximumf>, %27, %cst_17 [1] : vector<64x32xf32> to vector<64xf32>
    %29 = vector.shape_cast %28 : vector<64xf32> to vector<64x1xf32>
    %30 = vector.broadcast %29 : vector<64x1xf32> to vector<64x32xf32>
    %31 = arith.subf %27, %30 : vector<64x32xf32>
    %32 = math.exp %31 : vector<64x32xf32>
    %cst_18 = arith.constant dense<0.000000e+00> : vector<64xf32>
    %33 = vector.multi_reduction <add>, %32, %cst_18 [1] : vector<64x32xf32> to vector<64xf32>
    %34 = vector.shape_cast %33 : vector<64xf32> to vector<64x1xf32>
    %35 = tpu.reciprocal %34 {approx = true} : vector<64x1xf32> -> vector<64x1xf32>
    %36 = vector.broadcast %35 : vector<64x1xf32> to vector<64x32xf32>
    %37 = arith.mulf %32, %36 : vector<64x32xf32>
    %38 = tpu.iota {dimensions = array<i32: 0>} : vector<64x1xi32>
    %c64_i32 = arith.constant 64 : i32
    %39 = arith.muli %arg1, %c64_i32 : i32
    %40 = vector.broadcast %39 : i32 to vector<64x1xi32>
    %41 = arith.addi %38, %40 : vector<64x1xi32>
    %c144_i32 = arith.constant 144 : i32
    %42 = vector.broadcast %c144_i32 : i32 to vector<64x1xi32>
    %43 = arith.cmpi slt, %41, %42 : vector<64x1xi32>
    %cst_19 = arith.constant 0.000000e+00 : f32
    %44 = vector.shape_cast %43 : vector<64x1xi1> to vector<64x1xi1>
    %45 = vector.broadcast %44 : vector<64x1xi1> to vector<64x32xi1>
    %46 = vector.broadcast %cst_19 : f32 to vector<64x32xf32>
    %47 = arith.select %45, %37, %46 : vector<64x32xi1>, vector<64x32xf32>
    %c0_20 = arith.constant 0 : index
    %c0_21 = arith.constant 0 : index
    %48 = vector.load %arg12[%c0_20, %c0_21] : memref<32x128xf32, #tpu.memory_space<vmem>>, vector<32x128xf32>
    %49 = arith.truncf %47 : vector<64x32xf32> to vector<64x32xbf16>
    %cst_22 = arith.constant dense<0.000000e+00> : vector<32x128xf32>
    %50 = tpu.matmul %49, %12, %cst_22 {dimension_numbers = #tpu.dot_dimension_numbers<[0], [0], [1], [1], [0, 1, 1, 1], [], []>} : vector<64x32xbf16>, vector<64x128xbf16>, vector<32x128xf32> -> vector<32x128xf32>
    %51 = arith.addf %48, %50 : vector<32x128xf32>
    %c0_23 = arith.constant 0 : index
    %c0_24 = arith.constant 0 : index
    %52 = vector.load %arg12[%c0_23, %c0_24] : memref<32x128xf32, #tpu.memory_space<vmem>>, vector<32x128xf32>
    tpu.vector_store %arg12[%c0_23, %c0_24], %51 {strides = array<i32>} : memref<32x128xf32, #tpu.memory_space<vmem>>, vector<32x128xf32>,
    %c0_25 = arith.constant 0 : index
    %c0_26 = arith.constant 0 : index
    %53 = vector.load %arg13[%c0_25, %c0_26] : memref<32x1xf32, #tpu.memory_space<vmem>>, vector<32x1xf32>
    %cst_27 = arith.constant dense<0.000000e+00> : vector<32xf32>
    %54 = vector.multi_reduction <add>, %47, %cst_27 [0] : vector<64x32xf32> to vector<32xf32>
    %55 = vector.shape_cast %54 : vector<32xf32> to vector<32x1xf32>
    %56 = arith.addf %53, %55 : vector<32x1xf32>
    %c0_28 = arith.constant 0 : index
    %c0_29 = arith.constant 0 : index
    %57 = vector.load %arg13[%c0_28, %c0_29] : memref<32x1xf32, #tpu.memory_space<vmem>>, vector<32x1xf32>
    tpu.vector_store %arg13[%c0_28, %c0_29], %56 {strides = array<i32>} : memref<32x1xf32, #tpu.memory_space<vmem>>, vector<32x1xf32>,
    %c2_i32 = arith.constant 2 : i32
    %58 = arith.cmpi eq, %arg1, %c2_i32 : i32
    %59 = arith.extui %58 : i1 to i32
    %c0_i32_30 = arith.constant 0 : i32
    %60 = arith.cmpi ne, %59, %c0_i32_30 : i32
    scf.if %60 {
      %c0_31 = arith.constant 0 : index
      %c0_32 = arith.constant 0 : index
      %61 = vector.load %arg12[%c0_31, %c0_32] : memref<32x128xf32, #tpu.memory_space<vmem>>, vector<32x128xf32>
      %c0_33 = arith.constant 0 : index
      %c0_34 = arith.constant 0 : index
      %62 = vector.load %arg13[%c0_33, %c0_34] : memref<32x1xf32, #tpu.memory_space<vmem>>, vector<32x1xf32>
      %c0_35 = arith.constant 0 : index
      %c0_36 = arith.constant 0 : index
      %63 = vector.load %arg6[%c0_35, %c0_36] : memref<32x128xf32, #tpu.memory_space<vmem>>, vector<32x128xf32>
      %64 = vector.broadcast %62 : vector<32x1xf32> to vector<32x128xf32>
      %65 = arith.mulf %64, %63 : vector<32x128xf32>
      %66 = arith.subf %61, %65 : vector<32x128xf32>
      %c0_37 = arith.constant 0 : index
      %c0_38 = arith.constant 0 : index
      %67 = vector.load %arg9[%c0_37, %c0_38] : memref<32x1xf32, #tpu.memory_space<vmem>>, vector<32x1xf32>
      %68 = vector.broadcast %67 : vector<32x1xf32> to vector<32x128xf32>
      %69 = arith.mulf %66, %68 : vector<32x128xf32>
      %c0_39 = arith.constant 0 : index
      %c0_40 = arith.constant 0 : index
      %70 = vector.load %arg10[%c0_39, %c0_40] : memref<32x1xf32, #tpu.memory_space<vmem>>, vector<32x1xf32>
      %71 = vector.broadcast %70 : vector<32x1xf32> to vector<32x128xf32>
      %72 = arith.addf %69, %71 : vector<32x128xf32>
      %cst_41 = arith.constant 0.000000e+00 : f32
      %73 = vector.broadcast %cst_41 : f32 to vector<32x128xf32>
      %74 = arith.maximumf %72, %73 : vector<32x128xf32>
      %cst_42 = arith.constant dense<0.000000e+00> : vector<128xf32>
      %75 = vector.multi_reduction <add>, %74, %cst_42 [0] : vector<32x128xf32> to vector<128xf32>
      %76 = vector.shape_cast %75 : vector<128xf32> to vector<1x128xf32>
      %cst_43 = arith.constant 3.200000e+01 : f32
      %77 = vector.broadcast %cst_43 : f32 to vector<1x128xf32>
      %78 = arith.divf %76, %77 : vector<1x128xf32>
      %c0_44 = arith.constant 0 : index
      %c0_45 = arith.constant 0 : index
      %c0_46 = arith.constant 0 : index
      %79 = vector.load %arg11[%c0_44, %c0_45, %c0_46] : memref<1x1x128xf32, #tpu.memory_space<vmem>>, vector<1x1x128xf32>
      %80 = vector.shape_cast %79 : vector<1x1x128xf32> to vector<1x128xf32>
      %81 = vector.shape_cast %78 : vector<1x128xf32> to vector<1x1x128xf32>
      tpu.vector_store %arg11[%c0_44, %c0_45, %c0_46], %81 {strides = array<i32>} : memref<1x1x128xf32, #tpu.memory_space<vmem>>, vector<1x1x128xf32>,
    } else {
    }
    return
  }
  func.func @transform_0(%arg0: i32, %arg1: i32) -> (i32, i32, i32) {
    %c0_i32 = arith.constant 0 : i32
    %c0_i32_0 = arith.constant 0 : i32
    return %arg0, %arg1, %c0_i32 : i32, i32, i32
  }
  func.func @transform_1(%arg0: i32, %arg1: i32) -> (i32, i32) {
    %c0_i32 = arith.constant 0 : i32
    %c0_i32_0 = arith.constant 0 : i32
    %c0_i32_1 = arith.constant 0 : i32
    return %c0_i32, %c0_i32_0 : i32, i32
  }
  func.func @transform_2(%arg0: i32, %arg1: i32) -> (i32, i32) {
    %c0_i32 = arith.constant 0 : i32
    %c0_i32_0 = arith.constant 0 : i32
    %c0_i32_1 = arith.constant 0 : i32
    return %c0_i32, %c0_i32_0 : i32, i32
  }
  func.func @transform_3(%arg0: i32, %arg1: i32) -> (i32, i32) {
    %c0_i32 = arith.constant 0 : i32
    %c0_i32_0 = arith.constant 0 : i32
    %c0_i32_1 = arith.constant 0 : i32
    return %c0_i32, %c0_i32_0 : i32, i32
  }
  func.func @transform_4(%arg0: i32, %arg1: i32) -> (i32, i32) {
    %c0_i32 = arith.constant 0 : i32
    %c0_i32_0 = arith.constant 0 : i32
    %c0_i32_1 = arith.constant 0 : i32
    return %c0_i32, %c0_i32_0 : i32, i32
  }
  func.func @transform_5(%arg0: i32, %arg1: i32) -> (i32, i32) {
    %c0_i32 = arith.constant 0 : i32
    %c0_i32_0 = arith.constant 0 : i32
    %c0_i32_1 = arith.constant 0 : i32
    return %c0_i32, %c0_i32_0 : i32, i32
  }
  func.func @transform_6(%arg0: i32, %arg1: i32) -> (i32, i32) {
    %c0_i32 = arith.constant 0 : i32
    %c0_i32_0 = arith.constant 0 : i32
    %c0_i32_1 = arith.constant 0 : i32
    return %c0_i32, %c0_i32_0 : i32, i32
  }
  func.func @transform_7(%arg0: i32, %arg1: i32) -> (i32, i32) {
    %c0_i32 = arith.constant 0 : i32
    %c0_i32_0 = arith.constant 0 : i32
    %c0_i32_1 = arith.constant 0 : i32
    return %c0_i32, %c0_i32_0 : i32, i32
  }
  func.func @transform_8(%arg0: i32, %arg1: i32) -> (i32, i32) {
    %c0_i32 = arith.constant 0 : i32
    %c0_i32_0 = arith.constant 0 : i32
    %c0_i32_1 = arith.constant 0 : i32
    return %c0_i32, %c0_i32_0 : i32, i32
  }
  func.func @transform_9(%arg0: i32, %arg1: i32) -> (i32, i32, i32) {
    %c0_i32 = arith.constant 0 : i32
    %c0_i32_0 = arith.constant 0 : i32
    %c0_i32_1 = arith.constant 0 : i32
    return %arg0, %c0_i32, %c0_i32_0 : i32, i32, i32
  }
}

</mosaic_0001>

<llo_original>
// kernel: tpu_custom_call.1
$region0: #{tpu_custom_call.1}
  #allocation0 [shape = 'u32[]', space=smem, size = 0x4, offset = 0x4, fixed_abs, tag = 'smem constant byte address 0x4 - core index']
  #allocation1 [shape = 'u32[144,128]{1,0:T(1,128)}', space=vmem, size = 0x12000, scoped, tag = 'internal scratch']
  #allocation2 [shape = 'f32[32,128]{1,0:T(8,128)}', space=vmem, size = 0x4000, scoped, tag = 'scratch operand']
  #allocation3 [shape = 'f32[32,1]{1,0:T(8,128)}', space=vmem, size = 0x4000, scoped, tag = 'scratch operand']
  %s0 = inlined_call_operand.hbm [shape: bf16[2,192,128], index: 0, kind: input, shape index: {}]
  %s1 = inlined_call_operand.vmem [shape: bf16[128,128], index: 1, kind: input, shape index: {}]
  %s2 = inlined_call_operand.vmem [shape: f32[1,128], index: 2, kind: input, shape index: {}]
  %s3 = inlined_call_operand.vmem [shape: bf16[128,32], index: 3, kind: input, shape index: {}]
  %s4 = inlined_call_operand.vmem [shape: f32[32,128], index: 4, kind: input, shape index: {}]
  %s5 = inlined_call_operand.vmem [shape: f32[1,32], index: 5, kind: input, shape index: {}]
  %s6 = inlined_call_operand.vmem [shape: f32[1,32], index: 6, kind: input, shape index: {}]
  %s7 = inlined_call_operand.vmem [shape: f32[32,1], index: 7, kind: input, shape index: {}]
  %s8 = inlined_call_operand.vmem [shape: f32[32,1], index: 8, kind: input, shape index: {}]
  %s9 = inlined_call_operand.hbm [shape: f32[2,1,128], index: 9, kind: output, shape index: {}]
  %s10 = sld [smem:[#allocation0]]
  $region81: #{tpu_custom_call.1} parent=0
    _
  %s12 = ssub.s32 1, %s10
  %s13 = scalar_select 0, %s12, %s10
  $region1: #{tpu_custom_call.1} parent=0
    #allocation4 [shape = 'u8[32768]{0}', space=vmem, size = 0x8000, scoped, tag = 'input window, operand 0']
    #allocation5 [shape = 's32[2]{0}', space=sflag, size = 0x8, scoped, tag = 'scoped memory for tpu_custom_call.1']
    #allocation6 [shape = 's32[2]{0}', space=sflag, size = 0x8, scoped, tag = 'scoped memory for tpu_custom_call.1']
    #allocation7 [shape = 'u8[1024]{0}', space=vmem, size = 0x400, scoped, tag = 'output window, operand 0']
    %14 = vsyncpa [#allocation5], 0
    %s15 = scalar_lea.sflag [#allocation5], 1
    %16 = vsyncpa %s15, 0
    %17 = vsyncpa [#allocation6], 0
    %s18 = scalar_lea.sflag [#allocation6], 1
    %19 = vsyncpa %s18, 0
    loop: start=0, step=1, limit=8
    $region2: #{tpu_custom_call.1} parent=1 // loop_pre_header
      _
    $region3: #{tpu_custom_call.1} parent=1 // loop_header
      %s21 = sphi 0, %s25
      %p22 = scmp.ge.s32.totalorder %s21, 8
      %s28 = sphi 0, %s40
      %s29 = sphi 0, %s36
      %s30 = sphi 0, %s28
      %s31 = sphi 0, %s29
      %s32 = sphi 0, %s30
      %s33 = sphi 0, %s31
      %s45 = sphi 0, %s47
      %s48 = sphi 0, %s45
      %s49 = sphi 0, %s48
      %s65 = sphi 0, %s49
      %s69 = sphi 0, %s69
      %s71 = sphi 0, %s69
      %s72 = sphi 0, %s71
      %s86 = sphi 0, %s72
      %s90 = sphi 0, %s90
      %s92 = sphi 0, %s90
      %s93 = sphi 0, %s92
      %s107 = sphi 0, %s93
      %s111 = sphi 0, %s111
      %s113 = sphi 0, %s111
      %s114 = sphi 0, %s113
      %s128 = sphi 0, %s114
      %s132 = sphi 0, %s132
      %s134 = sphi 0, %s132
      %s135 = sphi 0, %s134
      %s149 = sphi 0, %s135
      %s153 = sphi 0, %s153
      %s155 = sphi 0, %s153
      %s156 = sphi 0, %s155
      %s170 = sphi 0, %s156
      %s174 = sphi 0, %s174
      %s176 = sphi 0, %s174
      %s177 = sphi 0, %s176
      %s191 = sphi 0, %s177
      %s195 = sphi 0, %s195
      %s197 = sphi 0, %s195
      %s198 = sphi 0, %s197
      %s212 = sphi 0, %s198
      %s216 = sphi 0, %s216
      %s218 = sphi 0, %s216
      %s219 = sphi 0, %s218
      %s233 = sphi 0, %s219
      %s239 = sphi 0, %s241
      %s242 = sphi 0, %s239
      %s243 = sphi 0, %s242
      %s259 = sphi 0, %s243
    $region4: #{tpu_custom_call.1} parent=1 // loop_header_branch
      %24 = sbr.rel (%p22) target = $region8
    $region5: #{tpu_custom_call.1} parent=1 // loop_body
      %s26 = ssub.s32 %s21, 1
      %s27 = ssub.s32 %s21, 2
      %s34 = sadd.s32 1, %s29
      %p35 = scmp.ge.s32.totalorder %s34, 3
      %s36 = scalar_select %p35, 0, %s34
      %s37 = sadd.s32 1, %s28
      %s38 = scalar_select %p35, %s37, %s28
      %p39 = scmp.ge.s32.totalorder %s38, 2
      %s40 = scalar_select %p39, 0, %s38
      %s41 = ssub.s32 %s28, %s40
      %s42 = ssub.s32 %s29, %s36
      %s43 = sor.u32 %s41, %s42
      %p44 = scmp.eq.s32.totalorder %s43, 0
      %s46 = sadd.s32 %s45, 1
      %s47 = scalar_select %p44, %s45, %s46
      %p50 = pneg %p44
      %p51 = scmp.eq.s32.totalorder %s21, 5
      %p52 = por %p50, %p51
      %p53 = scmp.ne.s32.totalorder %s45, %s48
      %p54 = scmp.eq.s32.totalorder %s21, 0
      %p55 = por %p53, %p54
      %p56 = scmp.ne.s32.totalorder %s45, %s48
      %p57 = scmp.eq.s32.totalorder %s26, 5
      %p58 = por %p56, %p57
      %p59 = scmp.ne.s32.totalorder %s48, %s49
      %p60 = scmp.eq.s32.totalorder %s26, 0
      %p61 = por %p59, %p60
      %p62 = scmp.ne.s32.totalorder %s48, %s49
      %p63 = scmp.eq.s32.totalorder %s27, 5
      %p64 = por %p62, %p63
      %p66 = scmp.ne.s32.totalorder %s49, %s65
      %p67 = scmp.eq.s32.totalorder %s27, 0
      %p68 = por %p66, %p67
      %s70 = sadd.s32 %s69, 1
      %p73 = scmp.eq.s32.totalorder %s21, 5
      %p74 = scmp.ne.s32.totalorder %s69, %s71
      %p75 = scmp.eq.s32.totalorder %s21, 0
      %p76 = por %p74, %p75
      %p77 = scmp.ne.s32.totalorder %s69, %s71
      %p78 = scmp.eq.s32.totalorder %s26, 5
      %p79 = por %p77, %p78
      %p80 = scmp.ne.s32.totalorder %s71, %s72
      %p81 = scmp.eq.s32.totalorder %s26, 0
      %p82 = por %p80, %p81
      %p83 = scmp.ne.s32.totalorder %s71, %s72
      %p84 = scmp.eq.s32.totalorder %s27, 5
      %p85 = por %p83, %p84
      %p87 = scmp.ne.s32.totalorder %s72, %s86
      %p88 = scmp.eq.s32.totalorder %s27, 0
      %p89 = por %p87, %p88
      %s91 = sadd.s32 %s90, 1
      %p94 = scmp.eq.s32.totalorder %s21, 5
      %p95 = scmp.ne.s32.totalorder %s90, %s92
      %p96 = scmp.eq.s32.totalorder %s21, 0
      %p97 = por %p95, %p96
      %p98 = scmp.ne.s32.totalorder %s90, %s92
      %p99 = scmp.eq.s32.totalorder %s26, 5
      %p100 = por %p98, %p99
      %p101 = scmp.ne.s32.totalorder %s92, %s93
      %p102 = scmp.eq.s32.totalorder %s26, 0
      %p103 = por %p101, %p102
      %p104 = scmp.ne.s32.totalorder %s92, %s93
      %p105 = scmp.eq.s32.totalorder %s27, 5
      %p106 = por %p104, %p105
      %p108 = scmp.ne.s32.totalorder %s93, %s107
      %p109 = scmp.eq.s32.totalorder %s27, 0
      %p110 = por %p108, %p109
      %s112 = sadd.s32 %s111, 1
      %p115 = scmp.eq.s32.totalorder %s21, 5
      %p116 = scmp.ne.s32.totalorder %s111, %s113
      %p117 = scmp.eq.s32.totalorder %s21, 0
      %p118 = por %p116, %p117
      %p119 = scmp.ne.s32.totalorder %s111, %s113
      %p120 = scmp.eq.s32.totalorder %s26, 5
      %p121 = por %p119, %p120
      %p122 = scmp.ne.s32.totalorder %s113, %s114
      %p123 = scmp.eq.s32.totalorder %s26, 0
      %p124 = por %p122, %p123
      %p125 = scmp.ne.s32.totalorder %s113, %s114
      %p126 = scmp.eq.s32.totalorder %s27, 5
      %p127 = por %p125, %p126
      %p129 = scmp.ne.s32.totalorder %s114, %s128
      %p130 = scmp.eq.s32.totalorder %s27, 0
      %p131 = por %p129, %p130
      %s133 = sadd.s32 %s132, 1
      %p136 = scmp.eq.s32.totalorder %s21, 5
      %p137 = scmp.ne.s32.totalorder %s132, %s134
      %p138 = scmp.eq.s32.totalorder %s21, 0
      %p139 = por %p137, %p138
      %p140 = scmp.ne.s32.totalorder %s132, %s134
      %p141 = scmp.eq.s32.totalorder %s26, 5
      %p142 = por %p140, %p141
      %p143 = scmp.ne.s32.totalorder %s134, %s135
      %p144 = scmp.eq.s32.totalorder %s26, 0
      %p145 = por %p143, %p144
      %p146 = scmp.ne.s32.totalorder %s134, %s135
      %p147 = scmp.eq.s32.totalorder %s27, 5
      %p148 = por %p146, %p147
      %p150 = scmp.ne.s32.totalorder %s135, %s149
      %p151 = scmp.eq.s32.totalorder %s27, 0
      %p152 = por %p150, %p151
      %s154 = sadd.s32 %s153, 1
      %p157 = scmp.eq.s32.totalorder %s21, 5
      %p158 = scmp.ne.s32.totalorder %s153, %s155
      %p159 = scmp.eq.s32.totalorder %s21, 0
      %p160 = por %p158, %p159
      %p161 = scmp.ne.s32.totalorder %s153, %s155
      %p162 = scmp.eq.s32.totalorder %s26, 5
      %p163 = por %p161, %p162
      %p164 = scmp.ne.s32.totalorder %s155, %s156
      %p165 = scmp.eq.s32.totalorder %s26, 0
      %p166 = por %p164, %p165
      %p167 = scmp.ne.s32.totalorder %s155, %s156
      %p168 = scmp.eq.s32.totalorder %s27, 5
      %p169 = por %p167, %p168
      %p171 = scmp.ne.s32.totalorder %s156, %s170
      %p172 = scmp.eq.s32.totalorder %s27, 0
      %p173 = por %p171, %p172
      %s175 = sadd.s32 %s174, 1
      %p178 = scmp.eq.s32.totalorder %s21, 5
      %p179 = scmp.ne.s32.totalorder %s174, %s176
      %p180 = scmp.eq.s32.totalorder %s21, 0
      %p181 = por %p179, %p180
      %p182 = scmp.ne.s32.totalorder %s174, %s176
      %p183 = scmp.eq.s32.totalorder %s26, 5
      %p184 = por %p182, %p183
      %p185 = scmp.ne.s32.totalorder %s176, %s177
      %p186 = scmp.eq.s32.totalorder %s26, 0
      %p187 = por %p185, %p186
      %p188 = scmp.ne.s32.totalorder %s176, %s177
      %p189 = scmp.eq.s32.totalorder %s27, 5
      %p190 = por %p188, %p189
      %p192 = scmp.ne.s32.totalorder %s177, %s191
      %p193 = scmp.eq.s32.totalorder %s27, 0
      %p194 = por %p192, %p193
      %s196 = sadd.s32 %s195, 1
      %p199 = scmp.eq.s32.totalorder %s21, 5
      %p200 = scmp.ne.s32.totalorder %s195, %s197
      %p201 = scmp.eq.s32.totalorder %s21, 0
      %p202 = por %p200, %p201
      %p203 = scmp.ne.s32.totalorder %s195, %s197
      %p204 = scmp.eq.s32.totalorder %s26, 5
      %p205 = por %p203, %p204
      %p206 = scmp.ne.s32.totalorder %s197, %s198
      %p207 = scmp.eq.s32.totalorder %s26, 0
      %p208 = por %p206, %p207
      %p209 = scmp.ne.s32.totalorder %s197, %s198
      %p210 = scmp.eq.s32.totalorder %s27, 5
      %p211 = por %p209, %p210
      %p213 = scmp.ne.s32.totalorder %s198, %s212
      %p214 = scmp.eq.s32.totalorder %s27, 0
      %p215 = por %p213, %p214
      %s217 = sadd.s32 %s216, 1
      %p220 = scmp.eq.s32.totalorder %s21, 5
      %p221 = scmp.ne.s32.totalorder %s216, %s218
      %p222 = scmp.eq.s32.totalorder %s21, 0
      %p223 = por %p221, %p222
      %p224 = scmp.ne.s32.totalorder %s216, %s218
      %p225 = scmp.eq.s32.totalorder %s26, 5
      %p226 = por %p224, %p225
      %p227 = scmp.ne.s32.totalorder %s218, %s219
      %p228 = scmp.eq.s32.totalorder %s26, 0
      %p229 = por %p227, %p228
      %p230 = scmp.ne.s32.totalorder %s218, %s219
      %p231 = scmp.eq.s32.totalorder %s27, 5
      %p232 = por %p230, %p231
      %p234 = scmp.ne.s32.totalorder %s219, %s233
      %p235 = scmp.eq.s32.totalorder %s27, 0
      %p236 = por %p234, %p235
      %s237 = ssub.s32 %s28, %s40
      %p238 = scmp.eq.s32.totalorder %s237, 0
      %s240 = sadd.s32 %s239, 1
      %s241 = scalar_select %p238, %s239, %s240
      %p244 = pneg %p238
      %p245 = scmp.eq.s32.totalorder %s21, 5
      %p246 = por %p244, %p245
      %p247 = scmp.ne.s32.totalorder %s239, %s242
      %p248 = scmp.eq.s32.totalorder %s21, 0
      %p249 = por %p247, %p248
      %p250 = scmp.ne.s32.totalorder %s239, %s242
      %p251 = scmp.eq.s32.totalorder %s26, 5
      %p252 = por %p250, %p251
      %p253 = scmp.ne.s32.totalorder %s242, %s243
      %p254 = scmp.eq.s32.totalorder %s26, 0
      %p255 = por %p253, %p254
      %p256 = scmp.ne.s32.totalorder %s242, %s243
      %p257 = scmp.eq.s32.totalorder %s27, 5
      %p258 = por %p256, %p257
      %p260 = scmp.ne.s32.totalorder %s243, %s259
      %p261 = scmp.eq.s32.totalorder %s27, 0
      %p262 = por %p260, %p261
      %p263 = scmp.le.s32.totalorder 1, %s21
      %p264 = scmp.lt.s32.totalorder %s21, 7
      %p265 = pnand %p263, %p264
      %p266 = pneg %p265
      // Predicated region
      $region9: #{tpu_custom_call.1} parent=5 // pred_check
        _
      $region10: #{tpu_custom_call.1} parent=5 // pred_check_branch
        %268 = sbr.rel (%p265) target = $region12
      $region11: #{tpu_custom_call.1} parent=5 // pred_region
        %s269 = ssub.s32 %s21, 1
        // Predicated region
        $region13: #{tpu_custom_call.1} parent=11 // pred_check
          %p270 = pneg %p82
        $region14: #{tpu_custom_call.1} parent=11 // pred_check_branch
          %272 = sbr.rel (%p270) target = $region16
        $region15: #{tpu_custom_call.1} parent=11 // pred_region
          _
        $region16: #{tpu_custom_call.1} parent=11 // pred_fallthru
          _
        // Predicated region
        $region17: #{tpu_custom_call.1} parent=11 // pred_check
          %p273 = pneg %p103
        $region18: #{tpu_custom_call.1} parent=11 // pred_check_branch
          %275 = sbr.rel (%p273) target = $region20
        $region19: #{tpu_custom_call.1} parent=11 // pred_region
          _
        $region20: #{tpu_custom_call.1} parent=11 // pred_fallthru
          _
        // Predicated region
        $region21: #{tpu_custom_call.1} parent=11 // pred_check
          %p276 = pneg %p124
        $region22: #{tpu_custom_call.1} parent=11 // pred_check_branch
          %278 = sbr.rel (%p276) target = $region24
        $region23: #{tpu_custom_call.1} parent=11 // pred_region
          _
        $region24: #{tpu_custom_call.1} parent=11 // pred_fallthru
          _
        // Predicated region
        $region25: #{tpu_custom_call.1} parent=11 // pred_check
          %p279 = pneg %p145
        $region26: #{tpu_custom_call.1} parent=11 // pred_check_branch
          %281 = sbr.rel (%p279) target = $region28
        $region27: #{tpu_custom_call.1} parent=11 // pred_region
          _
        $region28: #{tpu_custom_call.1} parent=11 // pred_fallthru
          _
        // Predicated region
        $region29: #{tpu_custom_call.1} parent=11 // pred_check
          %p282 = pneg %p166
        $region30: #{tpu_custom_call.1} parent=11 // pred_check_branch
          %284 = sbr.rel (%p282) target = $region32
        $region31: #{tpu_custom_call.1} parent=11 // pred_region
          _
        $region32: #{tpu_custom_call.1} parent=11 // pred_fallthru
          _
        // Predicated region
        $region33: #{tpu_custom_call.1} parent=11 // pred_check
          %p285 = pneg %p187
        $region34: #{tpu_custom_call.1} parent=11 // pred_check_branch
          %287 = sbr.rel (%p285) target = $region36
        $region35: #{tpu_custom_call.1} parent=11 // pred_region
          _
        $region36: #{tpu_custom_call.1} parent=11 // pred_fallthru
          _
        // Predicated region
        $region37: #{tpu_custom_call.1} parent=11 // pred_check
          %p288 = pneg %p208
        $region38: #{tpu_custom_call.1} parent=11 // pred_check_branch
          %290 = sbr.rel (%p288) target = $region40
        $region39: #{tpu_custom_call.1} parent=11 // pred_region
          _
        $region40: #{tpu_custom_call.1} parent=11 // pred_fallthru
          _
        // Predicated region
        $region41: #{tpu_custom_call.1} parent=11 // pred_check
          %p291 = pneg %p229
        $region42: #{tpu_custom_call.1} parent=11 // pred_check_branch
          %293 = sbr.rel (%p291) target = $region44
        $region43: #{tpu_custom_call.1} parent=11 // pred_region
          _
        $region44: #{tpu_custom_call.1} parent=11 // pred_fallthru
          _
      $region12: #{tpu_custom_call.1} parent=5 // pred_fallthru
        _
      %p294 = scmp.lt.s32.totalorder %s21, 6
      // Predicated region
      $region45: #{tpu_custom_call.1} parent=5 // pred_check
        %p295 = pneg %p294
      $region46: #{tpu_custom_call.1} parent=5 // pred_check_branch
        %297 = sbr.rel (%p295) target = $region48
      $region47: #{tpu_custom_call.1} parent=5 // pred_region
        // Predicated region
        $region49: #{tpu_custom_call.1} parent=47 // pred_check
          %p298 = pneg %p55
        $region50: #{tpu_custom_call.1} parent=47 // pred_check_branch
          %300 = sbr.rel (%p298) target = $region52
        $region51: #{tpu_custom_call.1} parent=47 // pred_region
          %s301 = sand.u32 %s45, 1
          %s302 = scalar_lea.sflag [#allocation5], %s301
          %s303 = sand.u32 %s45, 1
          %s304 = smul.addr %s303, 32
          %s305 = scalar_lea.vmem [#allocation4], %s304
          %s306 = smul.u32 8, %s29
          %s308 = ssub.s32 512, 512
          %309 = vsyncadd %s302, %s308
          %s310 = smul.addr %s28, 24
          %s311 = sadd.s32 %s306, %s310
          %s312 = smul.addr %s311, 64
          %s313 = scalar_lea.hbm %s0, %s312
          %s314 = sshll.u32 %s305, 4
          %s315 = int_to_ptr.vmem [resolvable:$true] %s314
          %320 = dma.hbm_to_vmem [thread:$0]  %s313, 512, %s315, %s302, 64, 64, 4
        $region52: #{tpu_custom_call.1} parent=47 // pred_fallthru
          _
      $region48: #{tpu_custom_call.1} parent=5 // pred_fallthru
        _
      %p321 = scmp.le.s32.totalorder 1, %s21
      %p322 = scmp.lt.s32.totalorder %s21, 7
      %p323 = pnand %p321, %p322
      %p324 = pneg %p323
      // Predicated region
      $region53: #{tpu_custom_call.1} parent=5 // pred_check
        _
      $region54: #{tpu_custom_call.1} parent=5 // pred_check_branch
        %326 = sbr.rel (%p323) target = $region56
      $region55: #{tpu_custom_call.1} parent=5 // pred_region
        %s327 = ssub.s32 %s21, 1
        %s328 = sand.u32 %s48, 1
        %s329 = scalar_lea.sflag [#allocation5], %s328
        %s330 = sand.u32 %s48, 1
        %s331 = smul.addr %s330, 32
        %s332 = scalar_lea.vmem [#allocation4], %s331
        // Predicated region
        $region57: #{tpu_custom_call.1} parent=55 // pred_check
          %p333 = pneg %p61
        $region58: #{tpu_custom_call.1} parent=55 // pred_check_branch
          %335 = sbr.rel (%p333) target = $region60
        $region59: #{tpu_custom_call.1} parent=55 // pred_region
          %336 = dma.done %s329, 512
        $region60: #{tpu_custom_call.1} parent=55 // pred_fallthru
          _
        %s337 = sand.u32 %s48, 1
        %s338 = scalar_lea.sflag [#allocation5], %s337
        %s339 = sand.u32 %s48, 1
        %s340 = smul.addr %s339, 32
        %s341 = scalar_lea.vmem [#allocation4], %s340
        %p342 = pneg %p61
        %p343 = pneg %p58
        %p344 = pneg %p82
        %p345 = pneg %p79
        %p346 = pneg %p103
        %p347 = pneg %p100
        %p348 = pneg %p124
        %p349 = pneg %p121
        %p350 = pneg %p145
        %p351 = pneg %p142
        %p352 = pneg %p166
        %p353 = pneg %p163
        %p354 = pneg %p187
        %p355 = pneg %p184
        %p356 = pneg %p208
        %p357 = pneg %p205
        %p358 = pneg %p229
        %p359 = pneg %p226
        %p360 = pneg %p255
        %p361 = pneg %p252
        %s362 = sand.u32 %s242, 1
        %s363 = scalar_lea.sflag [#allocation6], %s362
        %s364 = sand.u32 %s242, 1
        %s365 = scalar_lea.vmem [#allocation7], %s364
        %s366 = smul.u32 8, %s31
        %p368 = scmp.eq.s32.totalorder %s31, 0
        // Predicated region
        $region61: #{tpu_custom_call.1} parent=55 // pred_check
          %p369 = pneg %p368
        $region62: #{tpu_custom_call.1} parent=55 // pred_check_branch
          %371 = sbr.rel (%p369) target = $region64
        $region63: #{tpu_custom_call.1} parent=55 // pred_region
          %372 = vst [vmem:[#allocation2] sm:$0xff] 0.0
          %373 = vst [vmem:[#allocation2 + $0x8] sm:$0xff] 0.0
          %374 = vst [vmem:[#allocation2 + $0x10] sm:$0xff] 0.0
          %375 = vst [vmem:[#allocation2 + $0x18] sm:$0xff] 0.0
          %vm376 = vcmask 7168
          %377 = vst.msk [vmem:[#allocation3] sm:$0xff] %vm376, 0.0
          %378 = vst.msk [vmem:[#allocation3 + $0x8] sm:$0xff] %vm376, 0.0
          %379 = vst.msk [vmem:[#allocation3 + $0x10] sm:$0xff] %vm376, 0.0
          %380 = vst.msk [vmem:[#allocation3 + $0x18] sm:$0xff] %vm376, 0.0
        $region64: #{tpu_custom_call.1} parent=55 // pred_fallthru
          _
        %v381 = vld [vmem:[%s332] sm:$0xf]
        %v382 = vld [vmem:[%s332 + $0x4] sm:$0xf]
        %v383 = vld [vmem:[%s332 + $0x8] sm:$0xf]
        %v384 = vld [vmem:[%s332 + $0xc] sm:$0xf]
        %v385 = vld [vmem:[%s332 + $0x10] sm:$0xf]
        %v386 = vld [vmem:[%s332 + $0x14] sm:$0xf]
        %v387 = vld [vmem:[%s332 + $0x18] sm:$0xf]
        %v388 = vld [vmem:[%s332 + $0x1c] sm:$0xf]
        %v389 = vld [vmem:[%s1] sm:$0xf]
        %v390 = vld [vmem:[%s1 + $0x4] sm:$0xf]
        %v391 = vld [vmem:[%s1 + $0x8] sm:$0xf]
        %v392 = vld [vmem:[%s1 + $0xc] sm:$0xf]
        %v393 = vld [vmem:[%s1 + $0x10] sm:$0xf]
        %v394 = vld [vmem:[%s1 + $0x14] sm:$0xf]
        %v395 = vld [vmem:[%s1 + $0x18] sm:$0xf]
        %v396 = vld [vmem:[%s1 + $0x1c] sm:$0xf]
        %v397 = vld [vmem:[%s1 + $0x20] sm:$0xf]
        %v398 = vld [vmem:[%s1 + $0x24] sm:$0xf]
        %v399 = vld [vmem:[%s1 + $0x28] sm:$0xf]
        %v400 = vld [vmem:[%s1 + $0x2c] sm:$0xf]
        %v401 = vld [vmem:[%s1 + $0x30] sm:$0xf]
        %v402 = vld [vmem:[%s1 + $0x34] sm:$0xf]
        %v403 = vld [vmem:[%s1 + $0x38] sm:$0xf]
        %v404 = vld [vmem:[%s1 + $0x3c] sm:$0xf]
        %v405 = vld [vmem:[%s2] sm:$0x1]
        %v407 = vlaneseq
        %v408 = vshrl.u32 %v407, 7
        %v409 = vsub.s32 0, %v408
        %v410 = vrot.slane %v405, %v409
        %v420 = vunpack.c.l.b16 %v381
        %v421 = vunpack.c.l.b16 %v382
        %v422 = vunpack.c.l.b16 %v383
        %v423 = vunpack.c.l.b16 %v384
        %v424 = vunpack.c.l.b16 %v385
        %v425 = vunpack.c.l.b16 %v386
        %v426 = vunpack.c.l.b16 %v387
        %v427 = vunpack.c.l.b16 %v388
        %v428 = vpack.c.b16 %v421, %v420
        %v429 = vpack.c.b16 %v423, %v422
        %v430 = vpack.c.b16 %v425, %v424
        %v431 = vpack.c.b16 %v427, %v426
        %v452 = vunpack.c.l.b16 %v389
        %v453 = vunpack.c.l.b16 %v390
        %v454 = vunpack.c.l.b16 %v391
        %v455 = vunpack.c.l.b16 %v392
        %v456 = vunpack.c.l.b16 %v393
        %v457 = vunpack.c.l.b16 %v394
        %v458 = vunpack.c.l.b16 %v395
        %v459 = vunpack.c.l.b16 %v396
        %v460 = vunpack.c.l.b16 %v397
        %v461 = vunpack.c.l.b16 %v398
        %v462 = vunpack.c.l.b16 %v399
        %v463 = vunpack.c.l.b16 %v400
        %v464 = vunpack.c.l.b16 %v401
        %v465 = vunpack.c.l.b16 %v402
        %v466 = vunpack.c.l.b16 %v403
        %v467 = vunpack.c.l.b16 %v404
        %v468 = vpack.c.b16 %v453, %v452
        %v469 = vpack.c.b16 %v455, %v454
        %v470 = vpack.c.b16 %v457, %v456
        %v471 = vpack.c.b16 %v459, %v458
        %v472 = vpack.c.b16 %v461, %v460
        %v473 = vpack.c.b16 %v463, %v462
        %v474 = vpack.c.b16 %v465, %v464
        %v475 = vpack.c.b16 %v467, %v466
        %484 = vmatprep.subr.bf16.mxu0 0
        %485 = vmatpush1.bf16.msra.mxu0 %v468
        %486 = vmatprep.subr.bf16.mxu0 0
        %487 = vmatpush1.bf16.msra.mxu0 %v469
        %488 = vmatprep.subr.bf16.mxu0 0
        %489 = vmatpush1.bf16.msra.mxu0 %v470
        %490 = vmatprep.subr.bf16.mxu0 0
        %491 = vmatpush1.bf16.msra.mxu0 %v471
        %492 = vmatprep.subr.bf16.mxu0 0
        %493 = vmatpush1.bf16.msra.mxu0 %v472
        %494 = vmatprep.subr.bf16.mxu0 0
        %495 = vmatpush1.bf16.msra.mxu0 %v473
        %496 = vmatprep.subr.bf16.mxu0 0
        %497 = vmatpush1.bf16.msra.mxu0 %v474
        %498 = vmatprep.subr.bf16.mxu0 0
        %499 = vmatpush1.bf16.msra.mxu0 %v475
        %500 = vmatprep.subr.bf16.mxu0 0
        %501 = vmatpush1.bf16.msra.mxu0 0
        %502 = vmatprep.subr.bf16.mxu0 0
        %503 = vmatpush1.bf16.msra.mxu0 0
        %504 = vmatprep.subr.bf16.mxu0 0
        %505 = vmatpush1.bf16.msra.mxu0 0
        %506 = vmatprep.subr.bf16.mxu0 0
        %507 = vmatpush1.bf16.msra.mxu0 0
        %508 = vmatprep.subr.bf16.mxu0 0
        %509 = vmatpush1.bf16.msra.mxu0 0
        %510 = vmatprep.subr.bf16.mxu0 0
        %511 = vmatpush1.bf16.msra.mxu0 0
        %512 = vmatprep.subr.bf16.mxu0 0
        %513 = vmatpush1.bf16.msra.mxu0 0
        %514 = vmatprep.subr.bf16.mxu0 0
        %515 = vmatpush1.bf16.msra.mxu0 0
        %516 = vmatprep.mubr.bf16.mxu0 0
        %517 = vmatmul.mubr.bf16.gmra.mrb[0].mxu0 %v428
        %v518 = vpop.f32.mrb[0].mxu0
        %v519 = vadd.f32 %v410, %v518
        %v520 = vpop.f32.mrb[0].mxu0
        %v521 = vpop.f32.mrb[0].mxu0
        %v522 = vadd.f32 %v410, %v521
        %v523 = vpop.f32.mrb[0].mxu0
        %524 = vmatprep.mubr.bf16.mxu0 0
        %525 = vmatmul.mubr.bf16.gmra.mrb[0].mxu0 %v429
        %v526 = vpop.f32.mrb[0].mxu0
        %v527 = vadd.f32 %v410, %v526
        %v528 = vpop.f32.mrb[0].mxu0
        %v529 = vpop.f32.mrb[0].mxu0
        %v530 = vadd.f32 %v410, %v529
        %v531 = vpop.f32.mrb[0].mxu0
        %532 = vmatprep.mubr.bf16.mxu0 0
        %533 = vmatmul.mubr.bf16.gmra.mrb[0].mxu0 %v430
        %v534 = vpop.f32.mrb[0].mxu0
        %v535 = vadd.f32 %v410, %v534
        %v536 = vpop.f32.mrb[0].mxu0
        %v537 = vpop.f32.mrb[0].mxu0
        %v538 = vadd.f32 %v410, %v537
        %v539 = vpop.f32.mrb[0].mxu0
        %540 = vmatprep.mubr.bf16.mxu0 0
        %541 = vmatmul.mubr.bf16.gmra.mrb[0].mxu0 %v431
        %v542 = vpop.f32.mrb[0].mxu0
        %v543 = vadd.f32 %v410, %v542
        %v544 = vpop.f32.mrb[0].mxu0
        %v545 = vpop.f32.mrb[0].mxu0
        %v546 = vadd.f32 %v410, %v545
        %v547 = vpop.f32.mrb[0].mxu0
        %548 = vdwg.mxu0
        %v549 = vmax.f32 %v519, 0.0
        %v550 = vmax.f32 %v522, 0.0
        %v551 = vmax.f32 %v527, 0.0
        %v552 = vmax.f32 %v530, 0.0
        %v553 = vmax.f32 %v535, 0.0
        %v554 = vmax.f32 %v538, 0.0
        %v555 = vmax.f32 %v543, 0.0
        %v556 = vmax.f32 %v546, 0.0
        %v557 = vpack.c.bf16 %v550, %v549
        %v558 = vpack.c.bf16 %v552, %v551
        %v559 = vpack.c.bf16 %v554, %v553
        %v560 = vpack.c.bf16 %v556, %v555
        %v561 = vld [vmem:[%s3] sm:$0xf]
        %v562 = vld [vmem:[%s3 + $0x4] sm:$0xf]
        %v563 = vld [vmem:[%s3 + $0x8] sm:$0xf]
        %v564 = vld [vmem:[%s3 + $0xc] sm:$0xf]
        %v565 = vld [vmem:[%s3 + $0x10] sm:$0xf]
        %v566 = vld [vmem:[%s3 + $0x14] sm:$0xf]
        %v567 = vld [vmem:[%s3 + $0x18] sm:$0xf]
        %v568 = vld [vmem:[%s3 + $0x1c] sm:$0xf]
        %v569 = vld [vmem:[%s3 + $0x20] sm:$0xf]
        %v570 = vld [vmem:[%s3 + $0x24] sm:$0xf]
        %v571 = vld [vmem:[%s3 + $0x28] sm:$0xf]
        %v572 = vld [vmem:[%s3 + $0x2c] sm:$0xf]
        %v573 = vld [vmem:[%s3 + $0x30] sm:$0xf]
        %v574 = vld [vmem:[%s3 + $0x34] sm:$0xf]
        %v575 = vld [vmem:[%s3 + $0x38] sm:$0xf]
        %v576 = vld [vmem:[%s3 + $0x3c] sm:$0xf]
        %v593 = vunpack.c.l.b16 %v561
        %v594 = vunpack.c.l.b16 %v562
        %v595 = vunpack.c.l.b16 %v563
        %v596 = vunpack.c.l.b16 %v564
        %v597 = vunpack.c.l.b16 %v565
        %v598 = vunpack.c.l.b16 %v566
        %v599 = vunpack.c.l.b16 %v567
        %v600 = vunpack.c.l.b16 %v568
        %v601 = vunpack.c.l.b16 %v569
        %v602 = vunpack.c.l.b16 %v570
        %v603 = vunpack.c.l.b16 %v571
        %v604 = vunpack.c.l.b16 %v572
        %v605 = vunpack.c.l.b16 %v573
        %v606 = vunpack.c.l.b16 %v574
        %v607 = vunpack.c.l.b16 %v575
        %v608 = vunpack.c.l.b16 %v576
        %v609 = vpack.c.b16 %v594, %v593
        %v610 = vpack.c.b16 %v596, %v595
        %v611 = vpack.c.b16 %v598, %v597
        %v612 = vpack.c.b16 %v600, %v599
        %v613 = vpack.c.b16 %v602, %v601
        %v614 = vpack.c.b16 %v604, %v603
        %v615 = vpack.c.b16 %v606, %v605
        %v616 = vpack.c.b16 %v608, %v607
        %625 = vmatprep.subr.bf16.mxu0 0
        %626 = vmatpush1.bf16.msra.mxu0 %v609
        %627 = vmatprep.subr.bf16.mxu0 0
        %628 = vmatpush1.bf16.msra.mxu0 %v610
        %629 = vmatprep.subr.bf16.mxu0 0
        %630 = vmatpush1.bf16.msra.mxu0 %v611
        %631 = vmatprep.subr.bf16.mxu0 0
        %632 = vmatpush1.bf16.msra.mxu0 %v612
        %633 = vmatprep.subr.bf16.mxu0 0
        %634 = vmatpush1.bf16.msra.mxu0 %v613
        %635 = vmatprep.subr.bf16.mxu0 0
        %636 = vmatpush1.bf16.msra.mxu0 %v614
        %637 = vmatprep.subr.bf16.mxu0 0
        %638 = vmatpush1.bf16.msra.mxu0 %v615
        %639 = vmatprep.subr.bf16.mxu0 0
        %640 = vmatpush1.bf16.msra.mxu0 %v616
        %641 = vmatprep.subr.bf16.mxu0 0
        %642 = vmatpush1.bf16.msra.mxu0 0
        %643 = vmatprep.subr.bf16.mxu0 0
        %644 = vmatpush1.bf16.msra.mxu0 0
        %645 = vmatprep.subr.bf16.mxu0 0
        %646 = vmatpush1.bf16.msra.mxu0 0
        %647 = vmatprep.subr.bf16.mxu0 0
        %648 = vmatpush1.bf16.msra.mxu0 0
        %649 = vmatprep.subr.bf16.mxu0 0
        %650 = vmatpush1.bf16.msra.mxu0 0
        %651 = vmatprep.subr.bf16.mxu0 0
        %652 = vmatpush1.bf16.msra.mxu0 0
        %653 = vmatprep.subr.bf16.mxu0 0
        %654 = vmatpush1.bf16.msra.mxu0 0
        %655 = vmatprep.subr.bf16.mxu0 0
        %656 = vmatpush1.bf16.msra.mxu0 0
        %657 = vmatprep.mubr.bf16.mxu0 0
        %658 = vmatmul.mubr.bf16.gmra.mrb[0].mxu0 %v557
        %v659 = vpop.f32.mrb[0].mxu0
        %v660 = vadd.f32 0.0, %v659
        %v661 = vpop.f32.mrb[0].mxu0
        %v662 = vpop.f32.mrb[0].mxu0
        %v663 = vadd.f32 0.0, %v662
        %v664 = vpop.f32.mrb[0].mxu0
        %665 = vmatprep.mubr.bf16.mxu0 0
        %666 = vmatmul.mubr.bf16.gmra.mrb[0].mxu0 %v558
        %v667 = vpop.f32.mrb[0].mxu0
        %v668 = vadd.f32 0.0, %v667
        %v669 = vpop.f32.mrb[0].mxu0
        %v670 = vpop.f32.mrb[0].mxu0
        %v671 = vadd.f32 0.0, %v670
        %v672 = vpop.f32.mrb[0].mxu0
        %673 = vmatprep.mubr.bf16.mxu0 0
        %674 = vmatmul.mubr.bf16.gmra.mrb[0].mxu0 %v559
        %v675 = vpop.f32.mrb[0].mxu0
        %v676 = vadd.f32 0.0, %v675
        %v677 = vpop.f32.mrb[0].mxu0
        %v678 = vpop.f32.mrb[0].mxu0
        %v679 = vadd.f32 0.0, %v678
        %v680 = vpop.f32.mrb[0].mxu0
        %681 = vmatprep.mubr.bf16.mxu0 0
        %682 = vmatmul.mubr.bf16.gmra.mrb[0].mxu0 %v560
        %v683 = vpop.f32.mrb[0].mxu0
        %v684 = vadd.f32 0.0, %v683
        %v685 = vpop.f32.mrb[0].mxu0
        %v686 = vpop.f32.mrb[0].mxu0
        %v687 = vadd.f32 0.0, %v686
        %v688 = vpop.f32.mrb[0].mxu0
        %689 = vdwg.mxu0
        %v690 = vmul.f32 %v549, %v549
        %v691 = vmul.f32 %v550, %v550
        %v692 = vmul.f32 %v551, %v551
        %v693 = vmul.f32 %v552, %v552
        %v694 = vmul.f32 %v553, %v553
        %v695 = vmul.f32 %v554, %v554
        %v696 = vmul.f32 %v555, %v555
        %v697 = vmul.f32 %v556, %v556
        %698 = vadd.xlane.f32.xlu0 %v690
        %v699 = vpop.xlane.xlu0 %698
        %700 = vadd.xlane.f32.xlu0 %v691
        %v701 = vpop.xlane.xlu0 %700
        %702 = vadd.xlane.f32.xlu0 %v692
        %v703 = vpop.xlane.xlu0 %702
        %704 = vadd.xlane.f32.xlu0 %v693
        %v705 = vpop.xlane.xlu0 %704
        %706 = vadd.xlane.f32.xlu0 %v694
        %v707 = vpop.xlane.xlu0 %706
        %708 = vadd.xlane.f32.xlu0 %v695
        %v709 = vpop.xlane.xlu0 %708
        %710 = vadd.xlane.f32.xlu0 %v696
        %v711 = vpop.xlane.xlu0 %710
        %712 = vadd.xlane.f32.xlu0 %v697
        %v713 = vpop.xlane.xlu0 %712
        %v714 = vmul.f32 %v660, 2.0
        %v715 = vmul.f32 %v663, 2.0
        %v716 = vmul.f32 %v668, 2.0
        %v717 = vmul.f32 %v671, 2.0
        %v718 = vmul.f32 %v676, 2.0
        %v719 = vmul.f32 %v679, 2.0
        %v720 = vmul.f32 %v684, 2.0
        %v721 = vmul.f32 %v687, 2.0
        %v722 = vsub.f32 %v699, %v714
        %v723 = vsub.f32 %v701, %v715
        %v724 = vsub.f32 %v703, %v716
        %v725 = vsub.f32 %v705, %v717
        %v726 = vsub.f32 %v707, %v718
        %v727 = vsub.f32 %v709, %v719
        %v728 = vsub.f32 %v711, %v720
        %v729 = vsub.f32 %v713, %v721
        %v730 = vld [vmem:[%s6] sm:$0x1]
        %v732 = vlaneseq
        %v733 = vshrl.u32 %v732, 7
        %v734 = vsub.s32 0, %v733
        %v735 = vrot.slane %v730, %v734
        %v737 = vadd.f32 %v722, %v735
        %v738 = vadd.f32 %v723, %v735
        %v739 = vadd.f32 %v724, %v735
        %v740 = vadd.f32 %v725, %v735
        %v741 = vadd.f32 %v726, %v735
        %v742 = vadd.f32 %v727, %v735
        %v743 = vadd.f32 %v728, %v735
        %v744 = vadd.f32 %v729, %v735
        %v745 = vld [vmem:[%s5] sm:$0x1]
        %v747 = vlaneseq
        %v748 = vshrl.u32 %v747, 7
        %v749 = vsub.s32 0, %v748
        %v750 = vrot.slane %v745, %v749
        %v752 = vmul.f32 %v737, %v750
        %v753 = vmul.f32 %v738, %v750
        %v754 = vmul.f32 %v739, %v750
        %v755 = vmul.f32 %v740, %v750
        %v756 = vmul.f32 %v741, %v750
        %v757 = vmul.f32 %v742, %v750
        %v758 = vmul.f32 %v743, %v750
        %v759 = vmul.f32 %v744, %v750
        %vm760 = vcmask 261120
        %v761 = vsel %vm760, %v752, -inf
        %762 = vmax.xlane.f32.xlu0 %v761
        %v763 = vpop.xlane.xlu0 %762
        %v764 = vsel %vm760, %v753, -inf
        %765 = vmax.xlane.f32.xlu0 %v764
        %v766 = vpop.xlane.xlu0 %765
        %v767 = vsel %vm760, %v754, -inf
        %768 = vmax.xlane.f32.xlu0 %v767
        %v769 = vpop.xlane.xlu0 %768
        %v770 = vsel %vm760, %v755, -inf
        %771 = vmax.xlane.f32.xlu0 %v770
        %v772 = vpop.xlane.xlu0 %771
        %v773 = vsel %vm760, %v756, -inf
        %774 = vmax.xlane.f32.xlu0 %v773
        %v775 = vpop.xlane.xlu0 %774
        %v776 = vsel %vm760, %v757, -inf
        %777 = vmax.xlane.f32.xlu0 %v776
        %v778 = vpop.xlane.xlu0 %777
        %v779 = vsel %vm760, %v758, -inf
        %780 = vmax.xlane.f32.xlu0 %v779
        %v781 = vpop.xlane.xlu0 %780
        %v782 = vsel %vm760, %v759, -inf
        %783 = vmax.xlane.f32.xlu0 %v782
        %v784 = vpop.xlane.xlu0 %783
        %v785 = vsub.f32 %v752, %v763
        %v786 = vsub.f32 %v753, %v766
        %v787 = vsub.f32 %v754, %v769
        %v788 = vsub.f32 %v755, %v772
        %v789 = vsub.f32 %v756, %v775
        %v790 = vsub.f32 %v757, %v778
        %v791 = vsub.f32 %v758, %v781
        %v792 = vsub.f32 %v759, %v784
        %v793 = vmul.f32 %v785, 1.442695
        %v794 = vpow.pop %v793
        %v795 = vmul.f32 %v786, 1.442695
        %v796 = vpow.pop %v795
        %v797 = vmul.f32 %v787, 1.442695
        %v798 = vpow.pop %v797
        %v799 = vmul.f32 %v788, 1.442695
        %v800 = vpow.pop %v799
        %v801 = vmul.f32 %v789, 1.442695
        %v802 = vpow.pop %v801
        %v803 = vmul.f32 %v790, 1.442695
        %v804 = vpow.pop %v803
        %v805 = vmul.f32 %v791, 1.442695
        %v806 = vpow.pop %v805
        %v807 = vmul.f32 %v792, 1.442695
        %v808 = vpow.pop %v807
        %v809 = vsel %vm760, %v794, 0.0
        %810 = vadd.xlane.f32.xlu0 %v809
        %v811 = vpop.xlane.xlu0 %810
        %v812 = vsel %vm760, %v796, 0.0
        %813 = vadd.xlane.f32.xlu0 %v812
        %v814 = vpop.xlane.xlu0 %813
        %v815 = vsel %vm760, %v798, 0.0
        %816 = vadd.xlane.f32.xlu0 %v815
        %v817 = vpop.xlane.xlu0 %816
        %v818 = vsel %vm760, %v800, 0.0
        %819 = vadd.xlane.f32.xlu0 %v818
        %v820 = vpop.xlane.xlu0 %819
        %v821 = vsel %vm760, %v802, 0.0
        %822 = vadd.xlane.f32.xlu0 %v821
        %v823 = vpop.xlane.xlu0 %822
        %v824 = vsel %vm760, %v804, 0.0
        %825 = vadd.xlane.f32.xlu0 %v824
        %v826 = vpop.xlane.xlu0 %825
        %v827 = vsel %vm760, %v806, 0.0
        %828 = vadd.xlane.f32.xlu0 %v827
        %v829 = vpop.xlane.xlu0 %828
        %v830 = vsel %vm760, %v808, 0.0
        %831 = vadd.xlane.f32.xlu0 %v830
        %v832 = vpop.xlane.xlu0 %831
        %v833 = vrcp.pop %v811
        %v834 = vrcp.pop %v814
        %v835 = vrcp.pop %v817
        %v836 = vrcp.pop %v820
        %v837 = vrcp.pop %v823
        %v838 = vrcp.pop %v826
        %v839 = vrcp.pop %v829
        %v840 = vrcp.pop %v832
        %v841 = vmul.f32 %v794, %v833
        %v842 = vmul.f32 %v796, %v834
        %v843 = vmul.f32 %v798, %v835
        %v844 = vmul.f32 %v800, %v836
        %v845 = vmul.f32 %v802, %v837
        %v846 = vmul.f32 %v804, %v838
        %v847 = vmul.f32 %v806, %v839
        %v848 = vmul.f32 %v808, %v840
        %v849 = vlaneseq
        %v850 = vshrl.u32 %v849, 7
        %v851 = vadd.s32 %v850, 8
        %v852 = vadd.s32 %v850, 16
        %v853 = vadd.s32 %v850, 24
        %v854 = vadd.s32 %v850, 32
        %v855 = vadd.s32 %v850, 40
        %v856 = vadd.s32 %v850, 48
        %v857 = vadd.s32 %v850, 56
        %s858 = smul.u32 %s31, 64
        %v859 = vstv %s858
        %v860 = vadd.s32 %v850, %v859
        %v861 = vadd.s32 %v851, %v859
        %v862 = vadd.s32 %v852, %v859
        %v863 = vadd.s32 %v853, %v859
        %v864 = vadd.s32 %v854, %v859
        %v865 = vadd.s32 %v855, %v859
        %v866 = vadd.s32 %v856, %v859
        %v867 = vadd.s32 %v857, %v859
        %vm868 = vcmp.lt.s32.totalorder %v860, 144
        %vm869 = vcmp.lt.s32.totalorder %v861, 144
        %vm870 = vcmp.lt.s32.totalorder %v862, 144
        %vm871 = vcmp.lt.s32.totalorder %v863, 144
        %vm872 = vcmp.lt.s32.totalorder %v864, 144
        %vm873 = vcmp.lt.s32.totalorder %v865, 144
        %vm874 = vcmp.lt.s32.totalorder %v866, 144
        %vm875 = vcmp.lt.s32.totalorder %v867, 144
        %v876 = vsel %vm868, 1, 0
        %v877 = vsel %vm869, 1, 0
        %v878 = vsel %vm870, 1, 0
        %v879 = vsel %vm871, 1, 0
        %v880 = vsel %vm872, 1, 0
        %v881 = vsel %vm873, 1, 0
        %v882 = vsel %vm874, 1, 0
        %v883 = vsel %vm875, 1, 0
        %vm884 = vcmp.eq.s32.totalorder %v876, 1
        %vm885 = vcmp.eq.s32.totalorder %v877, 1
        %vm886 = vcmp.eq.s32.totalorder %v878, 1
        %vm887 = vcmp.eq.s32.totalorder %v879, 1
        %vm888 = vcmp.eq.s32.totalorder %v880, 1
        %vm889 = vcmp.eq.s32.totalorder %v881, 1
        %vm890 = vcmp.eq.s32.totalorder %v882, 1
        %vm891 = vcmp.eq.s32.totalorder %v883, 1
        %v892 = vsel %vm884, %v841, 0.0
        %v893 = vsel %vm885, %v842, 0.0
        %v894 = vsel %vm886, %v843, 0.0
        %v895 = vsel %vm887, %v844, 0.0
        %v896 = vsel %vm888, %v845, 0.0
        %v897 = vsel %vm889, %v846, 0.0
        %v898 = vsel %vm890, %v847, 0.0
        %v899 = vsel %vm891, %v848, 0.0
        %v900 = vld [vmem:[#allocation2] sm:$0xff]
        %v901 = vld [vmem:[#allocation2 + $0x8] sm:$0xff]
        %v902 = vld [vmem:[#allocation2 + $0x10] sm:$0xff]
        %v903 = vld [vmem:[#allocation2 + $0x18] sm:$0xff]
        %v904 = vpack.c.bf16 %v893, %v892
        %v905 = vpack.c.bf16 %v895, %v894
        %v906 = vpack.c.bf16 %v897, %v896
        %v907 = vpack.c.bf16 %v899, %v898
        %908 = vxpose.xlu0.c.b16.start [1/8] %v904, 128
        %909 = vxpose.xlu0.c.b16.cont [2/8] %v905, 128
        %910 = vxpose.xlu0.c.b16.cont [3/8] %v906, 128
        %911 = vxpose.xlu0.c.b16.cont [4/8] %v907, 128
        %912 = vxpose.xlu0.c.b16.cont [5/8] 0, 128
        %913 = vxpose.xlu0.c.b16.cont [6/8] 0, 128
        %914 = vxpose.xlu0.c.b16.cont [7/8] 0, 128
        %915 = vxpose.xlu0.c.b16.end [8/8] 0, 128
        %v916 = vpop.trf.xlu0
        %v917 = vpop.trf.xlu0
        %v918 = vpop.trf.xlu0
        %v919 = vpop.trf.xlu0
        %v920 = vpop.trf.xlu0
        %v921 = vpop.trf.xlu0
        %v922 = vpop.trf.xlu0
        %v923 = vpop.trf.xlu0
        %vm924 = vcmask 523264
        %v926 = vsel %vm924, %v916, 0
        %v929 = vsel %vm924, %v917, 0
        %931 = vmatprep.subr.bf16.mxu0 0
        %932 = vmatpush1.bf16.msra.mxu0 %v557
        %933 = vmatprep.subr.bf16.mxu0 0
        %934 = vmatpush1.bf16.msra.mxu0 %v558
        %935 = vmatprep.subr.bf16.mxu0 0
        %936 = vmatpush1.bf16.msra.mxu0 %v559
        %937 = vmatprep.subr.bf16.mxu0 0
        %938 = vmatpush1.bf16.msra.mxu0 %v560
        %939 = vmatprep.subr.bf16.mxu0 0
        %940 = vmatpush1.bf16.msra.mxu0 0
        %941 = vmatprep.subr.bf16.mxu0 0
        %942 = vmatpush1.bf16.msra.mxu0 0
        %943 = vmatprep.subr.bf16.mxu0 0
        %944 = vmatpush1.bf16.msra.mxu0 0
        %945 = vmatprep.subr.bf16.mxu0 0
        %946 = vmatpush1.bf16.msra.mxu0 0
        %947 = vmatprep.subr.bf16.mxu0 0
        %948 = vmatpush1.bf16.msra.mxu0 0
        %949 = vmatprep.subr.bf16.mxu0 0
        %950 = vmatpush1.bf16.msra.mxu0 0
        %951 = vmatprep.subr.bf16.mxu0 0
        %952 = vmatpush1.bf16.msra.mxu0 0
        %953 = vmatprep.subr.bf16.mxu0 0
        %954 = vmatpush1.bf16.msra.mxu0 0
        %955 = vmatprep.subr.bf16.mxu0 0
        %956 = vmatpush1.bf16.msra.mxu0 0
        %957 = vmatprep.subr.bf16.mxu0 0
        %958 = vmatpush1.bf16.msra.mxu0 0
        %959 = vmatprep.subr.bf16.mxu0 0
        %960 = vmatpush1.bf16.msra.mxu0 0
        %961 = vmatprep.subr.bf16.mxu0 0
        %962 = vmatpush1.bf16.msra.mxu0 0
        %963 = vmatprep.mubr.bf16.mxu0 0
        %964 = vmatmul.mubr.bf16.gmra.mrb[0].mxu0 %v926
        %v965 = vpop.f32.mrb[0].mxu0
        %v966 = vadd.f32 0.0, %v965
        %v967 = vpop.f32.mrb[0].mxu0
        %v968 = vpop.f32.mrb[0].mxu0
        %v969 = vadd.f32 0.0, %v968
        %v970 = vpop.f32.mrb[0].mxu0
        %971 = vmatprep.mubr.bf16.mxu0 0
        %972 = vmatmul.mubr.bf16.gmra.mrb[0].mxu0 %v929
        %v973 = vpop.f32.mrb[0].mxu0
        %v974 = vadd.f32 0.0, %v973
        %v975 = vpop.f32.mrb[0].mxu0
        %v976 = vpop.f32.mrb[0].mxu0
        %v977 = vadd.f32 0.0, %v976
        %v978 = vpop.f32.mrb[0].mxu0
        %979 = vdwg.mxu0
        %v980 = vadd.f32 %v900, %v966
        %v981 = vadd.f32 %v901, %v969
        %v982 = vadd.f32 %v902, %v974
        %v983 = vadd.f32 %v903, %v977
        %984 = vst [vmem:[#allocation2] sm:$0xff] %v980
        %985 = vst [vmem:[#allocation2 + $0x8] sm:$0xff] %v981
        %986 = vst [vmem:[#allocation2 + $0x10] sm:$0xff] %v982
        %987 = vst [vmem:[#allocation2 + $0x18] sm:$0xff] %v983
        %v988 = vld [vmem:[#allocation3] sm:$0xff]
        %v989 = vld [vmem:[#allocation3 + $0x8] sm:$0xff]
        %v990 = vld [vmem:[#allocation3 + $0x10] sm:$0xff]
        %v991 = vld [vmem:[#allocation3 + $0x18] sm:$0xff]
        %v992 = vsel %vm760, %v892, 0.0
        %v993 = vsel %vm760, %v893, 0.0
        %v994 = vadd.f32 %v992, %v993
        %v995 = vsel %vm760, %v894, 0.0
        %v996 = vadd.f32 %v994, %v995
        %v997 = vsel %vm760, %v895, 0.0
        %v998 = vadd.f32 %v996, %v997
        %v999 = vsel %vm760, %v896, 0.0
        %v1000 = vadd.f32 %v998, %v999
        %v1001 = vsel %vm760, %v897, 0.0
        %v1002 = vadd.f32 %v1000, %v1001
        %v1003 = vsel %vm760, %v898, 0.0
        %v1004 = vadd.f32 %v1002, %v1003
        %v1005 = vsel %vm760, %v899, 0.0
        %v1006 = vadd.f32 %v1004, %v1005
        %v1007 = vrot.slane %v1006, 4
        %v1008 = vadd.f32 %v1006, %v1007
        %v1009 = vrot.slane %v1008, 2
        %v1010 = vadd.f32 %v1008, %v1009
        %v1011 = vrot.slane %v1010, 1
        %v1012 = vadd.f32 %v1010, %v1011
        %1014 = vbcast.lane.b32.xlu0 %v1012, 256
        %v1015 = vpop.permute.xlu0 %1014
        %s1017 = sor.u32 256, 8
        %1018 = vbcast.lane.b32.xlu0 %v1012, %s1017
        %v1019 = vpop.permute.xlu0 %1018
        %s1021 = sor.u32 256, 16
        %1022 = vbcast.lane.b32.xlu0 %v1012, %s1021
        %v1023 = vpop.permute.xlu0 %1022
        %s1025 = sor.u32 256, 24
        %1026 = vbcast.lane.b32.xlu0 %v1012, %s1025
        %v1027 = vpop.permute.xlu0 %1026
        %v1028 = vadd.f32 %v988, %v1015
        %v1029 = vadd.f32 %v989, %v1019
        %v1030 = vadd.f32 %v990, %v1023
        %v1031 = vadd.f32 %v991, %v1027
        %vm1032 = vcmask 7168
        %1033 = vst.msk [vmem:[#allocation3] sm:$0xff] %vm1032, %v1028
        %1034 = vst.msk [vmem:[#allocation3 + $0x8] sm:$0xff] %vm1032, %v1029
        %1035 = vst.msk [vmem:[#allocation3 + $0x10] sm:$0xff] %vm1032, %v1030
        %1036 = vst.msk [vmem:[#allocation3 + $0x18] sm:$0xff] %vm1032, %v1031
        %p1037 = scmp.eq.s32.totalorder %s31, 2
        // Predicated region
        $region65: #{tpu_custom_call.1} parent=55 // pred_check
          %p1038 = pneg %p1037
        $region66: #{tpu_custom_call.1} parent=55 // pred_check_branch
          %1040 = sbr.rel (%p1038) target = $region68
        $region67: #{tpu_custom_call.1} parent=55 // pred_region
          %v1041 = vld [vmem:[#allocation2] sm:$0xff]
          %v1042 = vld [vmem:[#allocation2 + $0x8] sm:$0xff]
          %v1043 = vld [vmem:[#allocation2 + $0x10] sm:$0xff]
          %v1044 = vld [vmem:[#allocation2 + $0x18] sm:$0xff]
          %v1045 = vld [vmem:[#allocation3] sm:$0xff]
          %v1046 = vld [vmem:[#allocation3 + $0x8] sm:$0xff]
          %v1047 = vld [vmem:[#allocation3 + $0x10] sm:$0xff]
          %v1048 = vld [vmem:[#allocation3 + $0x18] sm:$0xff]
          %v1049 = vld [vmem:[%s4] sm:$0xff]
          %v1050 = vld [vmem:[%s4 + $0x8] sm:$0xff]
          %v1051 = vld [vmem:[%s4 + $0x10] sm:$0xff]
          %v1052 = vld [vmem:[%s4 + $0x18] sm:$0xff]
          %1054 = vset.pattern.permute.xlu0 0
          %1055 = vperm.xlu0 %1054, %v1045
          %v1056 = vpop.permute.xlu0 %1055
          %1059 = vset.pattern.permute.xlu0 0
          %1060 = vperm.xlu0 %1059, %v1046
          %v1061 = vpop.permute.xlu0 %1060
          %1064 = vset.pattern.permute.xlu0 0
          %1065 = vperm.xlu0 %1064, %v1047
          %v1066 = vpop.permute.xlu0 %1065
          %1069 = vset.pattern.permute.xlu0 0
          %1070 = vperm.xlu0 %1069, %v1048
          %v1071 = vpop.permute.xlu0 %1070
          %v1073 = vmul.f32 %v1056, %v1049
          %v1074 = vmul.f32 %v1061, %v1050
          %v1075 = vmul.f32 %v1066, %v1051
          %v1076 = vmul.f32 %v1071, %v1052
          %v1077 = vsub.f32 %v1041, %v1073
          %v1078 = vsub.f32 %v1042, %v1074
          %v1079 = vsub.f32 %v1043, %v1075
          %v1080 = vsub.f32 %v1044, %v1076
          %v1081 = vld [vmem:[%s7] sm:$0xff]
          %v1082 = vld [vmem:[%s7 + $0x8] sm:$0xff]
          %v1083 = vld [vmem:[%s7 + $0x10] sm:$0xff]
          %v1084 = vld [vmem:[%s7 + $0x18] sm:$0xff]
          %1086 = vset.pattern.permute.xlu0 0
          %1087 = vperm.xlu0 %1086, %v1081
          %v1088 = vpop.permute.xlu0 %1087
          %1091 = vset.pattern.permute.xlu0 0
          %1092 = vperm.xlu0 %1091, %v1082
          %v1093 = vpop.permute.xlu0 %1092
          %1096 = vset.pattern.permute.xlu0 0
          %1097 = vperm.xlu0 %1096, %v1083
          %v1098 = vpop.permute.xlu0 %1097
          %1101 = vset.pattern.permute.xlu0 0
          %1102 = vperm.xlu0 %1101, %v1084
          %v1103 = vpop.permute.xlu0 %1102
          %v1105 = vmul.f32 %v1077, %v1088
          %v1106 = vmul.f32 %v1078, %v1093
          %v1107 = vmul.f32 %v1079, %v1098
          %v1108 = vmul.f32 %v1080, %v1103
          %v1109 = vld [vmem:[%s8] sm:$0xff]
          %v1110 = vld [vmem:[%s8 + $0x8] sm:$0xff]
          %v1111 = vld [vmem:[%s8 + $0x10] sm:$0xff]
          %v1112 = vld [vmem:[%s8 + $0x18] sm:$0xff]
          %1114 = vset.pattern.permute.xlu0 0
          %1115 = vperm.xlu0 %1114, %v1109
          %v1116 = vpop.permute.xlu0 %1115
          %1119 = vset.pattern.permute.xlu0 0
          %1120 = vperm.xlu0 %1119, %v1110
          %v1121 = vpop.permute.xlu0 %1120
          %1124 = vset.pattern.permute.xlu0 0
          %1125 = vperm.xlu0 %1124, %v1111
          %v1126 = vpop.permute.xlu0 %1125
          %1129 = vset.pattern.permute.xlu0 0
          %1130 = vperm.xlu0 %1129, %v1112
          %v1131 = vpop.permute.xlu0 %1130
          %v1133 = vadd.f32 %v1105, %v1116
          %v1134 = vadd.f32 %v1106, %v1121
          %v1135 = vadd.f32 %v1107, %v1126
          %v1136 = vadd.f32 %v1108, %v1131
          %v1137 = vmax.f32 %v1133, 0.0
          %v1138 = vmax.f32 %v1134, 0.0
          %v1139 = vmax.f32 %v1135, 0.0
          %v1140 = vmax.f32 %v1136, 0.0
          %v1141 = vadd.f32 %v1137, %v1138
          %v1142 = vadd.f32 %v1141, %v1139
          %v1143 = vadd.f32 %v1142, %v1140
          %v1144 = vrot.slane %v1143, 4
          %v1145 = vadd.f32 %v1143, %v1144
          %v1146 = vrot.slane %v1145, 2
          %v1147 = vadd.f32 %v1145, %v1146
          %v1148 = vrot.slane %v1147, 1
          %v1149 = vadd.f32 %v1147, %v1148
          %v1150 = vrcp.pop 32.0
          %v1151 = vmul.f32 %v1149, %v1150
          %1152 = vst [vmem:[%s365] sm:$0x1] %v1151
        $region68: #{tpu_custom_call.1} parent=55 // pred_fallthru
          _
        %s1153 = sand.u32 %s242, 1
        %s1154 = scalar_lea.sflag [#allocation6], %s1153
        %s1155 = sand.u32 %s242, 1
        %s1156 = scalar_lea.vmem [#allocation7], %s1155
        // Predicated region
        $region69: #{tpu_custom_call.1} parent=55 // pred_check
          %p1157 = pneg %p252
        $region70: #{tpu_custom_call.1} parent=55 // pred_check_branch
          %1159 = sbr.rel (%p1157) target = $region72
        $region71: #{tpu_custom_call.1} parent=55 // pred_region
          %s1161 = ssub.s32 16, 16
          %1162 = vsyncadd %s1154, %s1161
          %s1163 = smul.addr %s30, 16
          %s1164 = scalar_lea.hbm %s9, %s1163
          %s1166 = sshll.u32 %s1156, 4
          %s1167 = int_to_ptr.vmem [resolvable:$true] %s1166
          %1169 = dma.vmem_to_hbm [thread:$0]  %s1167, 16, %s1164, %s1154
        $region72: #{tpu_custom_call.1} parent=55 // pred_fallthru
          _
      $region56: #{tpu_custom_call.1} parent=5 // pred_fallthru
        _
      %p1170 = scmp.le.s32.totalorder 2, %s21
      // Predicated region
      $region73: #{tpu_custom_call.1} parent=5 // pred_check
        %p1171 = pneg %p1170
      $region74: #{tpu_custom_call.1} parent=5 // pred_check_branch
        %1173 = sbr.rel (%p1171) target = $region76
      $region75: #{tpu_custom_call.1} parent=5 // pred_region
        %s1174 = ssub.s32 %s21, 2
        // Predicated region
        $region77: #{tpu_custom_call.1} parent=75 // pred_check
          %p1175 = pneg %p258
        $region78: #{tpu_custom_call.1} parent=75 // pred_check_branch
          %1177 = sbr.rel (%p1175) target = $region80
        $region79: #{tpu_custom_call.1} parent=75 // pred_region
          %s1178 = sand.u32 %s243, 1
          %s1179 = scalar_lea.sflag [#allocation6], %s1178
          %s1180 = sand.u32 %s243, 1
          %s1181 = scalar_lea.vmem [#allocation7], %s1180
          %1182 = dma.done %s1179, 16
        $region80: #{tpu_custom_call.1} parent=75 // pred_fallthru
          _
      $region76: #{tpu_custom_call.1} parent=5 // pred_fallthru
        _
    $region6: #{tpu_custom_call.1} parent=1 // loop_footer
      %s25 = sadd.s32 1, %s21
    $region7: #{tpu_custom_call.1} parent=1 // loop_footer_branch
      %20 = sbr.rel target = $region3
    $region8: #{tpu_custom_call.1} parent=1 // loop_exit
      _
    %1183 = vsyncpa [#allocation5], 1
    %s1184 = scalar_lea.sflag [#allocation5], 1
    %1185 = vsyncpa %s1184, 1
    %1186 = vsyncpa [#allocation6], 1
    %s1187 = scalar_lea.sflag [#allocation6], 1
    %1188 = vsyncpa %s1187, 1

</llo_original>
